<compile_context>
chip_gen: v5e
topology: v5e:2x2
jax: 0.10.0
libtpu: 0.0.40
codegen_flags: <defaults>
</compile_context>

<pallas_src>
import jax
import jax.numpy as jnp
from jax.experimental import pallas as pl
from jax.experimental.pallas import tpu as pltpu


def _band_weights(w_hwio, W):
    """(3,3,Cin,Cout) HWIO -> (3*W*Cin, W*Cout) tap-stacked block-banded matrix.

    Wb[ky*W*Cin + w_in*Cin + ci, w_out*Cout + co] = w[ky, w_in-w_out+1, ci, co]
    when |w_in - w_out| <= 1, else 0.  This folds the kx taps *and* the
    width-axis zero padding into the weights, and stacks the ky taps along the
    contraction axis, so each 3x3 conv is ONE dense MXU matmul on the packed
    (rows, W*C) activation layout with K = 3*W*Cin.
    """
    K, _, Cin, Cout = w_hwio.shape
    # sel[kx, w_in, w_out] = 1  iff  w_in == w_out + kx - 1
    sel = jnp.stack(
        [jnp.eye(W, W, k=1 - kx, dtype=w_hwio.dtype) for kx in range(K)])
    wb = jnp.einsum("xab,yxio->yaibo", sel, w_hwio)  # (ky, w_in, ci, w_out, co)
    return wb.reshape(K * W * Cin, W * Cout)


def _basic_block_kernel(x_ref, wb1_ref, s1_ref, b1_ref, wb2_ref, s2_ref,
                        b2_ref, out_ref, xpad, midpad, stg):
    # x_ref   : (B, H, W*Cin)  f32   packed input rows, B images
    # wb1_ref : (3*W*Cin, W*Cm) bf16 banded + ky-stacked conv1 weights
    # s1/b1   : (1, W*Cm)      f32   folded BN1 scale/bias (tiled over W)
    # wb2_ref : (3*W*Cm, W*Cm) bf16
    # s2/b2   : (1, W*Cm)      f32
    # out_ref : (B, H, W*Cm)   f32
    # xpad    : VMEM (B, H+2, W*Cin) f32  height-halo scratch for conv1
    # midpad  : VMEM (B, H+2, W*Cm)  f32  height-halo scratch for conv2
    # stg     : VMEM (B*H, 3*W*Cin)  bf16 K-stacked MXU LHS staging buffer
    B, H, WCin = x_ref.shape
    WCm = out_ref.shape[2]
    BH = B * H

    # Per-image height halos (width padding is folded into the banded weights).
    # Re-zeroed every step: four tiny (B,1,WC) stores, and correct even when
    # the "parallel" grid axis is sharded across TensorCores.
    zi = jnp.zeros((B, 1, WCin), jnp.float32)
    zm = jnp.zeros((B, 1, WCm), jnp.float32)
    xpad[:, 0:1, :] = zi
    xpad[:, H + 1:H + 2, :] = zi
    midpad[:, 0:1, :] = zm
    midpad[:, H + 1:H + 2, :] = zm

    xpad[:, 1:H + 1, :] = x_ref[...]

    # ---- conv1: stack the 3 ky taps along K into one (BH, 3*WCin) bf16 LHS
    #      and do a single MXU contraction (K = 3*W*Cin). ----
    for ky in range(3):
        stg[:, ky * WCin:(ky + 1) * WCin] = (
            xpad[:, ky:ky + H, :].reshape(BH, WCin).astype(jnp.bfloat16))
    acc1 = jnp.dot(stg[...], wb1_ref[...],
                   preferred_element_type=jnp.float32)       # (BH, WCm) f32

    # ---- BN1 (folded) + ReLU (f32) -> padded intermediate ----
    mid = jnp.maximum(acc1 * s1_ref[...] + b1_ref[...], 0.0)
    midpad[:, 1:H + 1, :] = mid.reshape(B, H, WCm)

    # ---- conv2: same K-stacked single contraction ----
    for ky in range(3):
        stg[:, ky * WCm:(ky + 1) * WCm] = (
            midpad[:, ky:ky + H, :].reshape(BH, WCm).astype(jnp.bfloat16))
    acc2 = jnp.dot(stg[...], wb2_ref[...],
                   preferred_element_type=jnp.float32)       # (BH, WCm) f32

    # ---- BN2 (folded) + identity shortcut (exact f32 input) + ReLU ----
    res = acc2 * s2_ref[...] + b2_ref[...] + x_ref[...].reshape(BH, WCin)
    out_ref[...] = jnp.maximum(res, 0.0).reshape(B, H, WCm)


def basic_block_pallas(x_nchw, w1, s1, b1, w2, s2, b2, *, images_per_step=8):
    """x_nchw: (N, Cin, H, W) f32.  w1/w2: HWIO.  s*/b*: folded BN, shape (C,)."""
    N, Cin, H, W = x_nchw.shape
    Cmid = w1.shape[-1]
    assert Cin == Cmid, "identity shortcut requires in_planes == planes"
    WCin, WCm = W * Cin, W * Cmid
    assert WCin % 128 == 0, "lane-dense packing needs W*Cin % 128 == 0"
    assert H % 8 == 0, "packed row layout assumes H a multiple of 8"

    # Images per grid step: raise MXU M to B*H (~128) and grow DMA tiles,
    # keeping B a divisor of N.
    B = 1
    for cand in range(min(images_per_step, N), 0, -1):
        if N % cand == 0:
            B = cand
            break

    # NCHW -> lane-packed rows (N, H, W*C).
    x_pk = jnp.transpose(x_nchw, (0, 2, 3, 1)).reshape(N, H, WCin)

    # kx taps + width padding folded in, ky taps stacked along K, bf16 for MXU.
    wb1 = _band_weights(w1, W).astype(jnp.bfloat16)   # (3*W*Cin, W*Cmid)
    wb2 = _band_weights(w2, W).astype(jnp.bfloat16)   # (3*W*Cmid, W*Cmid)

    # Folded BN scale/bias replicated across the packed width axis (f32).
    s1t = jnp.tile(s1.astype(jnp.float32), W).reshape(1, WCm)
    b1t = jnp.tile(b1.astype(jnp.float32), W).reshape(1, WCm)
    s2t = jnp.tile(s2.astype(jnp.float32), W).reshape(1, WCm)
    b2t = jnp.tile(b2.astype(jnp.float32), W).reshape(1, WCm)

    out_pk = pl.pallas_call(
        _basic_block_kernel,
        out_shape=jax.ShapeDtypeStruct((N, H, WCm), jnp.float32),
        grid_spec=pltpu.PrefetchScalarGridSpec(
            num_scalar_prefetch=0,
            grid=(N // B,),
            in_specs=[
                pl.BlockSpec((B, H, WCin), lambda n: (n, 0, 0)),
                pl.BlockSpec((3 * WCin, WCm), lambda n: (0, 0)),
                pl.BlockSpec((1, WCm), lambda n: (0, 0)),
                pl.BlockSpec((1, WCm), lambda n: (0, 0)),
                pl.BlockSpec((3 * WCm, WCm), lambda n: (0, 0)),
                pl.BlockSpec((1, WCm), lambda n: (0, 0)),
                pl.BlockSpec((1, WCm), lambda n: (0, 0)),
            ],
            out_specs=pl.BlockSpec((B, H, WCm), lambda n: (n, 0, 0)),
            scratch_shapes=[
                pltpu.VMEM((B, H + 2, WCin), jnp.float32),
                pltpu.VMEM((B, H + 2, WCm), jnp.float32),
                pltpu.VMEM((B * H, 3 * WCin), jnp.bfloat16),
            ],
        ),
        compiler_params=pltpu.CompilerParams(
            dimension_semantics=("parallel",)),
    )(x_pk, wb1, s1t, b1t, wb2, s2t, b2t)

    # Packed rows -> NCHW to match the PyTorch module's output convention.
    return jnp.transpose(out_pk.reshape(N, H, W, Cmid), (0, 3, 1, 2))


# ----------------------------- reference (pure JAX) -------------------------
def _conv3x3_ref(x_nhwc, w_hwio):
    return jax.lax.conv_general_dilated(
        x_nhwc, w_hwio, window_strides=(1, 1), padding=((1, 1), (1, 1)),
        dimension_numbers=("NHWC", "HWIO", "NHWC"),
        preferred_element_type=jnp.float32)


def basic_block_ref(x_nchw, w1, s1, b1, w2, s2, b2):
    # Same numerics as the kernel: bf16 conv operands, f32 accumulation,
    # f32 BN / ReLU / residual (residual uses the exact f32 input).
    x = jnp.transpose(x_nchw, (0, 2, 3, 1))
    o = _conv3x3_ref(x.astype(jnp.bfloat16), w1.astype(jnp.bfloat16))
    o = jnp.maximum(o * s1 + b1, 0.0)
    o = _conv3x3_ref(o.astype(jnp.bfloat16), w2.astype(jnp.bfloat16)) * s2 + b2
    o = jnp.maximum(o + x, 0.0)
    return jnp.transpose(o, (0, 3, 1, 2))


def fold_bn(gamma, beta, mean, var, eps=1e-5):
    scale = gamma / jnp.sqrt(var + eps)
    bias = beta - mean * scale
    return scale, bias


if __name__ == "__main__":
    key = jax.random.PRNGKey(0)
    # in_planes = planes = 8, stride = 1 (identity shortcut), W*C = 128 lanes.
    # N=16 -> 8 images per grid step (M = 128 per MXU push), 2 grid steps.
    N, C, H, W = 16, 8, 16, 16
    ks = jax.random.split(key, 12)

    x = jax.random.normal(ks[0], (N, C, H, W), jnp.float32)

    # conv weights (HWIO) ~ PyTorch (O,I,3,3) transposed.
    w1 = jax.random.normal(ks[1], (3, 3, C, C), jnp.float32) * 0.1
    w2 = jax.random.normal(ks[2], (3, 3, C, C), jnp.float32) * 0.1

    # BatchNorm parameters (inference mode with running stats).
    g1 = 1.0 + 0.1 * jax.random.normal(ks[3], (C,), jnp.float32)
    be1 = 0.1 * jax.random.normal(ks[4], (C,), jnp.float32)
    m1 = 0.1 * jax.random.normal(ks[5], (C,), jnp.float32)
    v1 = jnp.abs(jax.random.normal(ks[6], (C,), jnp.float32)) + 0.5
    g2 = 1.0 + 0.1 * jax.random.normal(ks[7], (C,), jnp.float32)
    be2 = 0.1 * jax.random.normal(ks[8], (C,), jnp.float32)
    m2 = 0.1 * jax.random.normal(ks[9], (C,), jnp.float32)
    v2 = jnp.abs(jax.random.normal(ks[10], (C,), jnp.float32)) + 0.5

    s1, b1 = fold_bn(g1, be1, m1, v1)
    s2, b2 = fold_bn(g2, be2, m2, v2)

    run = jax.jit(basic_block_pallas)
    out = jax.block_until_ready(run(x, w1, s1, b1, w2, s2, b2))

    ref = basic_block_ref(x, w1, s1, b1, w2, s2, b2)
    assert out.shape == (N, C, H, W)
    err = float(jnp.max(jnp.abs(out - ref)))
    assert jnp.allclose(out, ref, atol=2e-3, rtol=2e-3), err

    print("KERNEL_OK")
</pallas_src>

<mosaic_0001>
module attributes {stable_mosaic.version = 11 : i64} {
  func.func @_basic_block_kernel(%arg0: i32, %arg1: memref<8x16x128xf32, #tpu.memory_space<vmem>>, %arg2: memref<384x128xbf16, #tpu.memory_space<vmem>>, %arg3: memref<1x128xf32, #tpu.memory_space<vmem>>, %arg4: memref<1x128xf32, #tpu.memory_space<vmem>>, %arg5: memref<384x128xbf16, #tpu.memory_space<vmem>>, %arg6: memref<1x128xf32, #tpu.memory_space<vmem>>, %arg7: memref<1x128xf32, #tpu.memory_space<vmem>>, %arg8: memref<8x16x128xf32, #tpu.memory_space<vmem>>, %arg9: memref<8x18x128xf32, #tpu.memory_space<vmem>>, %arg10: memref<8x18x128xf32, #tpu.memory_space<vmem>>, %arg11: memref<128x384xbf16, #tpu.memory_space<vmem>>) attributes {dimension_semantics = [#tpu.dimension_semantics<parallel>], iteration_bounds = array<i64: 2>, scalar_prefetch = 0 : i64, scratch_operands = 3 : i64, tpu.core_type = #tpu.core_type<tc>, window_params = [{transform_indices = @transform_0, window_bounds = array<i64: 8, 16, 128>}, {pipeline_mode = #tpu.pipeline_mode<synchronous>, transform_indices = @transform_1, window_bounds = array<i64: 384, 128>}, {pipeline_mode = #tpu.pipeline_mode<synchronous>, transform_indices = @transform_2, window_bounds = array<i64: 1, 128>}, {pipeline_mode = #tpu.pipeline_mode<synchronous>, transform_indices = @transform_3, window_bounds = array<i64: 1, 128>}, {pipeline_mode = #tpu.pipeline_mode<synchronous>, transform_indices = @transform_4, window_bounds = array<i64: 384, 128>}, {pipeline_mode = #tpu.pipeline_mode<synchronous>, transform_indices = @transform_5, window_bounds = array<i64: 1, 128>}, {pipeline_mode = #tpu.pipeline_mode<synchronous>, transform_indices = @transform_6, window_bounds = array<i64: 1, 128>}, {transform_indices = @transform_7, window_bounds = array<i64: 8, 16, 128>}]} {
    %cst = arith.constant 0.000000e+00 : f32
    %0 = vector.broadcast %cst : f32 to vector<8x1x128xf32>
    %cst_0 = arith.constant 0.000000e+00 : f32
    %1 = vector.broadcast %cst_0 : f32 to vector<8x1x128xf32>
    %c0 = arith.constant 0 : index
    %c0_1 = arith.constant 0 : index
    %c0_2 = arith.constant 0 : index
    %2 = vector.load %arg9[%c0, %c0_1, %c0_2] : memref<8x18x128xf32, #tpu.memory_space<vmem>>, vector<8x1x128xf32>
    tpu.vector_store %arg9[%c0, %c0_1, %c0_2], %0 {strides = array<i32>} : memref<8x18x128xf32, #tpu.memory_space<vmem>>, vector<8x1x128xf32>,
    %c0_3 = arith.constant 0 : index
    %c17 = arith.constant 17 : index
    %c0_4 = arith.constant 0 : index
    %3 = vector.load %arg9[%c0_3, %c17, %c0_4] : memref<8x18x128xf32, #tpu.memory_space<vmem>>, vector<8x1x128xf32>
    tpu.vector_store %arg9[%c0_3, %c17, %c0_4], %0 {strides = array<i32>} : memref<8x18x128xf32, #tpu.memory_space<vmem>>, vector<8x1x128xf32>,
    %c0_5 = arith.constant 0 : index
    %c0_6 = arith.constant 0 : index
    %c0_7 = arith.constant 0 : index
    %4 = vector.load %arg10[%c0_5, %c0_6, %c0_7] : memref<8x18x128xf32, #tpu.memory_space<vmem>>, vector<8x1x128xf32>
    tpu.vector_store %arg10[%c0_5, %c0_6, %c0_7], %1 {strides = array<i32>} : memref<8x18x128xf32, #tpu.memory_space<vmem>>, vector<8x1x128xf32>,
    %c0_8 = arith.constant 0 : index
    %c17_9 = arith.constant 17 : index
    %c0_10 = arith.constant 0 : index
    %5 = vector.load %arg10[%c0_8, %c17_9, %c0_10] : memref<8x18x128xf32, #tpu.memory_space<vmem>>, vector<8x1x128xf32>
    tpu.vector_store %arg10[%c0_8, %c17_9, %c0_10], %1 {strides = array<i32>} : memref<8x18x128xf32, #tpu.memory_space<vmem>>, vector<8x1x128xf32>,
    %c0_11 = arith.constant 0 : index
    %c0_12 = arith.constant 0 : index
    %c0_13 = arith.constant 0 : index
    %6 = vector.load %arg1[%c0_11, %c0_12, %c0_13] : memref<8x16x128xf32, #tpu.memory_space<vmem>>, vector<8x16x128xf32>
    %c0_14 = arith.constant 0 : index
    %c1 = arith.constant 1 : index
    %c0_15 = arith.constant 0 : index
    %7 = vector.load %arg9[%c0_14, %c1, %c0_15] : memref<8x18x128xf32, #tpu.memory_space<vmem>>, vector<8x16x128xf32>
    tpu.vector_store %arg9[%c0_14, %c1, %c0_15], %6 {strides = array<i32>} : memref<8x18x128xf32, #tpu.memory_space<vmem>>, vector<8x16x128xf32>,
    %c0_16 = arith.constant 0 : index
    %c0_17 = arith.constant 0 : index
    %c0_18 = arith.constant 0 : index
    %8 = vector.load %arg9[%c0_16, %c0_17, %c0_18] : memref<8x18x128xf32, #tpu.memory_space<vmem>>, vector<8x16x128xf32>
    %9 = vector.shape_cast %8 : vector<8x16x128xf32> to vector<128x128xf32>
    %10 = arith.truncf %9 : vector<128x128xf32> to vector<128x128xbf16>
    %c0_19 = arith.constant 0 : index
    %c0_20 = arith.constant 0 : index
    %11 = vector.load %arg11[%c0_19, %c0_20] : memref<128x384xbf16, #tpu.memory_space<vmem>>, vector<128x128xbf16>
    tpu.vector_store %arg11[%c0_19, %c0_20], %10 {strides = array<i32>} : memref<128x384xbf16, #tpu.memory_space<vmem>>, vector<128x128xbf16>,
    %c0_21 = arith.constant 0 : index
    %c1_22 = arith.constant 1 : index
    %c0_23 = arith.constant 0 : index
    %12 = vector.load %arg9[%c0_21, %c1_22, %c0_23] : memref<8x18x128xf32, #tpu.memory_space<vmem>>, vector<8x16x128xf32>
    %13 = vector.shape_cast %12 : vector<8x16x128xf32> to vector<128x128xf32>
    %14 = arith.truncf %13 : vector<128x128xf32> to vector<128x128xbf16>
    %c0_24 = arith.constant 0 : index
    %c128 = arith.constant 128 : index
    %15 = vector.load %arg11[%c0_24, %c128] : memref<128x384xbf16, #tpu.memory_space<vmem>>, vector<128x128xbf16>
    tpu.vector_store %arg11[%c0_24, %c128], %14 {strides = array<i32>} : memref<128x384xbf16, #tpu.memory_space<vmem>>, vector<128x128xbf16>,
    %c0_25 = arith.constant 0 : index
    %c2 = arith.constant 2 : index
    %c0_26 = arith.constant 0 : index
    %16 = vector.load %arg9[%c0_25, %c2, %c0_26] : memref<8x18x128xf32, #tpu.memory_space<vmem>>, vector<8x16x128xf32>
    %17 = vector.shape_cast %16 : vector<8x16x128xf32> to vector<128x128xf32>
    %18 = arith.truncf %17 : vector<128x128xf32> to vector<128x128xbf16>
    %c0_27 = arith.constant 0 : index
    %c256 = arith.constant 256 : index
    %19 = vector.load %arg11[%c0_27, %c256] : memref<128x384xbf16, #tpu.memory_space<vmem>>, vector<128x128xbf16>
    tpu.vector_store %arg11[%c0_27, %c256], %18 {strides = array<i32>} : memref<128x384xbf16, #tpu.memory_space<vmem>>, vector<128x128xbf16>,
    %c0_28 = arith.constant 0 : index
    %c0_29 = arith.constant 0 : index
    %20 = vector.load %arg11[%c0_28, %c0_29] : memref<128x384xbf16, #tpu.memory_space<vmem>>, vector<128x384xbf16>
    %c0_30 = arith.constant 0 : index
    %c0_31 = arith.constant 0 : index
    %21 = vector.load %arg2[%c0_30, %c0_31] : memref<384x128xbf16, #tpu.memory_space<vmem>>, vector<384x128xbf16>
    %cst_32 = arith.constant dense<0.000000e+00> : vector<128x128xf32>
    %22 = tpu.matmul %20, %21, %cst_32 {dimension_numbers = #tpu.dot_dimension_numbers<[1], [0], [0], [1], [0, 0, 1, 1], [], []>} : vector<128x384xbf16>, vector<384x128xbf16>, vector<128x128xf32> -> vector<128x128xf32>
    %c0_33 = arith.constant 0 : index
    %c0_34 = arith.constant 0 : index
    %23 = vector.load %arg3[%c0_33, %c0_34] : memref<1x128xf32, #tpu.memory_space<vmem>>, vector<1x128xf32>
    %24 = vector.broadcast %23 : vector<1x128xf32> to vector<128x128xf32>
    %25 = arith.mulf %22, %24 : vector<128x128xf32>
    %c0_35 = arith.constant 0 : index
    %c0_36 = arith.constant 0 : index
    %26 = vector.load %arg4[%c0_35, %c0_36] : memref<1x128xf32, #tpu.memory_space<vmem>>, vector<1x128xf32>
    %27 = vector.broadcast %26 : vector<1x128xf32> to vector<128x128xf32>
    %28 = arith.addf %25, %27 : vector<128x128xf32>
    %cst_37 = arith.constant 0.000000e+00 : f32
    %29 = vector.broadcast %cst_37 : f32 to vector<128x128xf32>
    %30 = arith.maximumf %28, %29 : vector<128x128xf32>
    %31 = vector.shape_cast %30 : vector<128x128xf32> to vector<8x16x128xf32>
    %c0_38 = arith.constant 0 : index
    %c1_39 = arith.constant 1 : index
    %c0_40 = arith.constant 0 : index
    %32 = vector.load %arg10[%c0_38, %c1_39, %c0_40] : memref<8x18x128xf32, #tpu.memory_space<vmem>>, vector<8x16x128xf32>
    tpu.vector_store %arg10[%c0_38, %c1_39, %c0_40], %31 {strides = array<i32>} : memref<8x18x128xf32, #tpu.memory_space<vmem>>, vector<8x16x128xf32>,
    %c0_41 = arith.constant 0 : index
    %c0_42 = arith.constant 0 : index
    %c0_43 = arith.constant 0 : index
    %33 = vector.load %arg10[%c0_41, %c0_42, %c0_43] : memref<8x18x128xf32, #tpu.memory_space<vmem>>, vector<8x16x128xf32>
    %34 = vector.shape_cast %33 : vector<8x16x128xf32> to vector<128x128xf32>
    %35 = arith.truncf %34 : vector<128x128xf32> to vector<128x128xbf16>
    %c0_44 = arith.constant 0 : index
    %c0_45 = arith.constant 0 : index
    %36 = vector.load %arg11[%c0_44, %c0_45] : memref<128x384xbf16, #tpu.memory_space<vmem>>, vector<128x128xbf16>
    tpu.vector_store %arg11[%c0_44, %c0_45], %35 {strides = array<i32>} : memref<128x384xbf16, #tpu.memory_space<vmem>>, vector<128x128xbf16>,
    %c0_46 = arith.constant 0 : index
    %c1_47 = arith.constant 1 : index
    %c0_48 = arith.constant 0 : index
    %37 = vector.load %arg10[%c0_46, %c1_47, %c0_48] : memref<8x18x128xf32, #tpu.memory_space<vmem>>, vector<8x16x128xf32>
    %38 = vector.shape_cast %37 : vector<8x16x128xf32> to vector<128x128xf32>
    %39 = arith.truncf %38 : vector<128x128xf32> to vector<128x128xbf16>
    %c0_49 = arith.constant 0 : index
    %c128_50 = arith.constant 128 : index
    %40 = vector.load %arg11[%c0_49, %c128_50] : memref<128x384xbf16, #tpu.memory_space<vmem>>, vector<128x128xbf16>
    tpu.vector_store %arg11[%c0_49, %c128_50], %39 {strides = array<i32>} : memref<128x384xbf16, #tpu.memory_space<vmem>>, vector<128x128xbf16>,
    %c0_51 = arith.constant 0 : index
    %c2_52 = arith.constant 2 : index
    %c0_53 = arith.constant 0 : index
    %41 = vector.load %arg10[%c0_51, %c2_52, %c0_53] : memref<8x18x128xf32, #tpu.memory_space<vmem>>, vector<8x16x128xf32>
    %42 = vector.shape_cast %41 : vector<8x16x128xf32> to vector<128x128xf32>
    %43 = arith.truncf %42 : vector<128x128xf32> to vector<128x128xbf16>
    %c0_54 = arith.constant 0 : index
    %c256_55 = arith.constant 256 : index
    %44 = vector.load %arg11[%c0_54, %c256_55] : memref<128x384xbf16, #tpu.memory_space<vmem>>, vector<128x128xbf16>
    tpu.vector_store %arg11[%c0_54, %c256_55], %43 {strides = array<i32>} : memref<128x384xbf16, #tpu.memory_space<vmem>>, vector<128x128xbf16>,
    %c0_56 = arith.constant 0 : index
    %c0_57 = arith.constant 0 : index
    %45 = vector.load %arg11[%c0_56, %c0_57] : memref<128x384xbf16, #tpu.memory_space<vmem>>, vector<128x384xbf16>
    %c0_58 = arith.constant 0 : index
    %c0_59 = arith.constant 0 : index
    %46 = vector.load %arg5[%c0_58, %c0_59] : memref<384x128xbf16, #tpu.memory_space<vmem>>, vector<384x128xbf16>
    %cst_60 = arith.constant dense<0.000000e+00> : vector<128x128xf32>
    %47 = tpu.matmul %45, %46, %cst_60 {dimension_numbers = #tpu.dot_dimension_numbers<[1], [0], [0], [1], [0, 0, 1, 1], [], []>} : vector<128x384xbf16>, vector<384x128xbf16>, vector<128x128xf32> -> vector<128x128xf32>
    %c0_61 = arith.constant 0 : index
    %c0_62 = arith.constant 0 : index
    %48 = vector.load %arg6[%c0_61, %c0_62] : memref<1x128xf32, #tpu.memory_space<vmem>>, vector<1x128xf32>
    %49 = vector.broadcast %48 : vector<1x128xf32> to vector<128x128xf32>
    %50 = arith.mulf %47, %49 : vector<128x128xf32>
    %c0_63 = arith.constant 0 : index
    %c0_64 = arith.constant 0 : index
    %51 = vector.load %arg7[%c0_63, %c0_64] : memref<1x128xf32, #tpu.memory_space<vmem>>, vector<1x128xf32>
    %52 = vector.broadcast %51 : vector<1x128xf32> to vector<128x128xf32>
    %53 = arith.addf %50, %52 : vector<128x128xf32>
    %c0_65 = arith.constant 0 : index
    %c0_66 = arith.constant 0 : index
    %c0_67 = arith.constant 0 : index
    %54 = vector.load %arg1[%c0_65, %c0_66, %c0_67] : memref<8x16x128xf32, #tpu.memory_space<vmem>>, vector<8x16x128xf32>
    %55 = vector.shape_cast %54 : vector<8x16x128xf32> to vector<128x128xf32>
    %56 = arith.addf %53, %55 : vector<128x128xf32>
    %cst_68 = arith.constant 0.000000e+00 : f32
    %57 = vector.broadcast %cst_68 : f32 to vector<128x128xf32>
    %58 = arith.maximumf %56, %57 : vector<128x128xf32>
    %59 = vector.shape_cast %58 : vector<128x128xf32> to vector<8x16x128xf32>
    %c0_69 = arith.constant 0 : index
    %c0_70 = arith.constant 0 : index
    %c0_71 = arith.constant 0 : index
    %60 = vector.load %arg8[%c0_69, %c0_70, %c0_71] : memref<8x16x128xf32, #tpu.memory_space<vmem>>, vector<8x16x128xf32>
    tpu.vector_store %arg8[%c0_69, %c0_70, %c0_71], %59 {strides = array<i32>} : memref<8x16x128xf32, #tpu.memory_space<vmem>>, vector<8x16x128xf32>,
    return
  }
  func.func @transform_0(%arg0: i32) -> (i32, i32, i32) {
    %c0_i32 = arith.constant 0 : i32
    %c0_i32_0 = arith.constant 0 : i32
    %c0_i32_1 = arith.constant 0 : i32
    return %arg0, %c0_i32, %c0_i32_0 : i32, i32, i32
  }
  func.func @transform_1(%arg0: i32) -> (i32, i32) {
    %c0_i32 = arith.constant 0 : i32
    %c0_i32_0 = arith.constant 0 : i32
    %c0_i32_1 = arith.constant 0 : i32
    return %c0_i32, %c0_i32_0 : i32, i32
  }
  func.func @transform_2(%arg0: i32) -> (i32, i32) {
    %c0_i32 = arith.constant 0 : i32
    %c0_i32_0 = arith.constant 0 : i32
    %c0_i32_1 = arith.constant 0 : i32
    return %c0_i32, %c0_i32_0 : i32, i32
  }
  func.func @transform_3(%arg0: i32) -> (i32, i32) {
    %c0_i32 = arith.constant 0 : i32
    %c0_i32_0 = arith.constant 0 : i32
    %c0_i32_1 = arith.constant 0 : i32
    return %c0_i32, %c0_i32_0 : i32, i32
  }
  func.func @transform_4(%arg0: i32) -> (i32, i32) {
    %c0_i32 = arith.constant 0 : i32
    %c0_i32_0 = arith.constant 0 : i32
    %c0_i32_1 = arith.constant 0 : i32
    return %c0_i32, %c0_i32_0 : i32, i32
  }
  func.func @transform_5(%arg0: i32) -> (i32, i32) {
    %c0_i32 = arith.constant 0 : i32
    %c0_i32_0 = arith.constant 0 : i32
    %c0_i32_1 = arith.constant 0 : i32
    return %c0_i32, %c0_i32_0 : i32, i32
  }
  func.func @transform_6(%arg0: i32) -> (i32, i32) {
    %c0_i32 = arith.constant 0 : i32
    %c0_i32_0 = arith.constant 0 : i32
    %c0_i32_1 = arith.constant 0 : i32
    return %c0_i32, %c0_i32_0 : i32, i32
  }
  func.func @transform_7(%arg0: i32) -> (i32, i32, i32) {
    %c0_i32 = arith.constant 0 : i32
    %c0_i32_0 = arith.constant 0 : i32
    %c0_i32_1 = arith.constant 0 : i32
    return %arg0, %c0_i32, %c0_i32_0 : i32, i32, i32
  }
}

</mosaic_0001>

<llo_original>
// kernel: tile.23
$region0: #{tile.23}
  #allocation0 [shape = 's32[1]{0}', space=sflag, size = 0x4, scoped, tag = 'scoped memory for tile.23']
  %s0 = inlined_call_operand.vmem [shape: f32[8], index: 0, kind: input, shape index: {}]
  %s1 = inlined_call_operand.vmem [shape: f32[16,8], index: 1, kind: output, shape index: {}]
  // Predicated region
  $region2: #{tile.23} parent=0 // pred_check
    _
  $region3: #{tile.23} parent=0 // pred_check_branch
    %3 = sbr.rel (0) target = $region5
  $region4: #{tile.23} parent=0 // pred_region
    _
  $region5: #{tile.23} parent=0 // pred_fallthru
    _
  %v4 = vld [vmem:[%s0] ss:$0 sm:$0xff]
  %5 = vst [vmem:[%s1] sm:$0xff] %v4
  %s6 = scalar_lea.vmem %s1, 8
  %7 = vst [vmem:[%s6] sm:$0xff] %v4

// kernel: tile.24
$region0: #{tile.24}
  %s0 = inlined_call_operand.vmem [shape: f32[16,8], index: 0, kind: input, shape index: {}]
  %s1 = inlined_call_operand.vmem [shape: f32[1,128], index: 1, kind: output, shape index: {}]
  $region1: #{tile.24} parent=0
    #allocation0 [shape = 'u8[4096]{0}', space=vmem, size = 0x1000, scoped, tag = 'scoped mem for output reshape']
    %v2 = vld [vmem:[%s0] sm:$0x1]
    %vm3 = vcmask 64512
    %4 = vst.msk [vmem:[#allocation0] sm:$0x1] %vm3, %v2
    %s5 = scalar_lea.vmem %s0, 15
    %v6 = vld [vmem:[%s5] sm:$0x1]
    %7 = vrot.lane.b32.xlu0 %v6, 120
    %v8 = vpop.permute.xlu0 %7
    %vm9 = vcmask 1048512
    %10 = vst.msk [vmem:[#allocation0] sm:$0x1] %vm9, %v8
    %s11 = scalar_lea.vmem %s0, 14
    %v12 = vld [vmem:[%s11] sm:$0x1]
    %13 = vrot.lane.b32.xlu0 %v12, 112
    %v14 = vpop.permute.xlu0 %13
    %vm15 = vcmask 982912
    %16 = vst.msk [vmem:[#allocation0] sm:$0x1] %vm15, %v14
    %s17 = scalar_lea.vmem %s0, 13
    %v18 = vld [vmem:[%s17] sm:$0x1]
    %19 = vrot.lane.b32.xlu0 %v18, 104
    %v20 = vpop.permute.xlu0 %19
    %vm21 = vcmask 917312
    %22 = vst.msk [vmem:[#allocation0] sm:$0x1] %vm21, %v20
    %s23 = scalar_lea.vmem %s0, 12
    %v24 = vld [vmem:[%s23] sm:$0x1]
    %25 = vrot.lane.b32.xlu0 %v24, 96
    %v26 = vpop.permute.xlu0 %25
    %vm27 = vcmask 851712
    %28 = vst.msk [vmem:[#allocation0] sm:$0x1] %vm27, %v26
    %s29 = scalar_lea.vmem %s0, 11
    %v30 = vld [vmem:[%s29] sm:$0x1]
    %31 = vrot.lane.b32.xlu0 %v30, 88
    %v32 = vpop.permute.xlu0 %31
    %vm33 = vcmask 786112
    %34 = vst.msk [vmem:[#allocation0] sm:$0x1] %vm33, %v32
    %s35 = scalar_lea.vmem %s0, 10
    %v36 = vld [vmem:[%s35] sm:$0x1]
    %37 = vrot.lane.b32.xlu0 %v36, 80
    %v38 = vpop.permute.xlu0 %37
    %vm39 = vcmask 720512
    %40 = vst.msk [vmem:[#allocation0] sm:$0x1] %vm39, %v38
    %s41 = scalar_lea.vmem %s0, 9
    %v42 = vld [vmem:[%s41] sm:$0x1]
    %43 = vrot.lane.b32.xlu0 %v42, 72
    %v44 = vpop.permute.xlu0 %43
    %vm45 = vcmask 654912
    %46 = vst.msk [vmem:[#allocation0] sm:$0x1] %vm45, %v44
    %s47 = scalar_lea.vmem %s0, 8
    %v48 = vld [vmem:[%s47] sm:$0x1]
    %49 = vrot.lane.b32.xlu0 %v48, 64
    %v50 = vpop.permute.xlu0 %49
    %vm51 = vcmask 589312
    %52 = vst.msk [vmem:[#allocation0] sm:$0x1] %vm51, %v50
    %s53 = scalar_lea.vmem %s0, 7
    %v54 = vld [vmem:[%s53] sm:$0x1]
    %55 = vrot.lane.b32.xlu0 %v54, 56
    %v56 = vpop.permute.xlu0 %55
    %vm57 = vcmask 523712
    %58 = vst.msk [vmem:[#allocation0] sm:$0x1] %vm57, %v56
    %s59 = scalar_lea.vmem %s0, 6
    %v60 = vld [vmem:[%s59] sm:$0x1]
    %61 = vrot.lane.b32.xlu0 %v60, 48
    %v62 = vpop.permute.xlu0 %61
    %vm63 = vcmask 458112
    %64 = vst.msk [vmem:[#allocation0] sm:$0x1] %vm63, %v62
    %s65 = scalar_lea.vmem %s0, 5
    %v66 = vld [vmem:[%s65] sm:$0x1]
    %67 = vrot.lane.b32.xlu0 %v66, 40
    %v68 = vpop.permute.xlu0 %67
    %vm69 = vcmask 392512
    %70 = vst.msk [vmem:[#allocation0] sm:$0x1] %vm69, %v68
    %s71 = scalar_lea.vmem %s0, 4
    %v72 = vld [vmem:[%s71] sm:$0x1]
    %73 = vrot.lane.b32.xlu0 %v72, 32
    %v74 = vpop.permute.xlu0 %73
    %vm75 = vcmask 326912
    %76 = vst.msk [vmem:[#allocation0] sm:$0x1] %vm75, %v74
    %s77 = scalar_lea.vmem %s0, 3
    %v78 = vld [vmem:[%s77] sm:$0x1]
    %79 = vrot.lane.b32.xlu0 %v78, 24
    %v80 = vpop.permute.xlu0 %79
    %vm81 = vcmask 261312
    %82 = vst.msk [vmem:[#allocation0] sm:$0x1] %vm81, %v80
    %s83 = scalar_lea.vmem %s0, 2
    %v84 = vld [vmem:[%s83] sm:$0x1]
    %85 = vrot.lane.b32.xlu0 %v84, 16
    %v86 = vpop.permute.xlu0 %85
    %vm87 = vcmask 195712
    %88 = vst.msk [vmem:[#allocation0] sm:$0x1] %vm87, %v86
    %s89 = scalar_lea.vmem %s0, 1
    %v90 = vld [vmem:[%s89] sm:$0x1]
    %91 = vrot.lane.b32.xlu0 %v90, 8
    %v92 = vpop.permute.xlu0 %91
    %vm93 = vcmask 130112
    %94 = vst.msk [vmem:[#allocation0] sm:$0x1] %vm93, %v92
    %s96 = ssub.s32 2, 1
    %v97 = vld [vmem:[#allocation0] sm:%s96]
    %s99 = ssub.s32 2, 1
    %100 = vst [vmem:[%s1] sm:%s99] %v97

// kernel: basic_block_pallas.1
$region0: #{basic_block_pallas.1}
  #allocation0 [shape = 'u32[]', space=smem, size = 0x4, offset = 0x4, fixed_abs, tag = 'smem constant byte address 0x4 - core index']
  #allocation1 [shape = 'u32[72,128]{1,0:T(1,128)}', space=vmem, size = 0x9000, scoped, tag = 'internal scratch']
  #allocation2 [shape = 'f32[8,18,128]{2,1,0:T(8,128)}', space=vmem, size = 0x18000, scoped, tag = 'scratch operand']
  #allocation3 [shape = 'f32[8,18,128]{2,1,0:T(8,128)}', space=vmem, size = 0x18000, scoped, tag = 'scratch operand']
  #allocation4 [shape = 'bf16[128,384]{1,0:T(8,128)(2,1)}', space=vmem, size = 0x18000, scoped, tag = 'scratch operand']
  %s0 = inlined_call_operand.vmem [shape: f32[16,16,128], index: 0, kind: input, shape index: {}]
  %s1 = inlined_call_operand.vmem [shape: bf16[384,128], index: 1, kind: input, shape index: {}]
  %s2 = inlined_call_operand.vmem [shape: f32[1,128], index: 2, kind: input, shape index: {}]
  %s3 = inlined_call_operand.vmem [shape: f32[1,128], index: 3, kind: input, shape index: {}]
  %s4 = inlined_call_operand.vmem [shape: bf16[384,128], index: 4, kind: input, shape index: {}]
  %s5 = inlined_call_operand.vmem [shape: f32[1,128], index: 5, kind: input, shape index: {}]
  %s6 = inlined_call_operand.vmem [shape: f32[1,128], index: 6, kind: input, shape index: {}]
  %s7 = inlined_call_operand.vmem [shape: f32[16,16,128], index: 7, kind: output, shape index: {}]
  %s8 = sld [smem:[#allocation0]]
  $region61: #{basic_block_pallas.1} parent=0
    _
  %s10 = ssub.s32 1, %s8
  %s11 = scalar_select 0, %s10, %s8
  loop: start=0, step=1, limit=4
  $region2: #{basic_block_pallas.1} parent=0 // loop_pre_header
    _
  $region3: #{basic_block_pallas.1} parent=0 // loop_header
    %s13 = sphi 0, %s17
    %p14 = scmp.ge.s32.totalorder %s13, 4
    %s23 = sphi 0, %s25
    %s26 = sphi 0, %s23
    %s27 = sphi 0, %s26
    %s43 = sphi 0, %s27
    %s47 = sphi 0, %s47
    %s49 = sphi 0, %s47
    %s50 = sphi 0, %s49
    %s64 = sphi 0, %s50
    %s68 = sphi 0, %s68
    %s70 = sphi 0, %s68
    %s71 = sphi 0, %s70
    %s85 = sphi 0, %s71
    %s89 = sphi 0, %s89
    %s91 = sphi 0, %s89
    %s92 = sphi 0, %s91
    %s106 = sphi 0, %s92
    %s110 = sphi 0, %s110
    %s112 = sphi 0, %s110
    %s113 = sphi 0, %s112
    %s127 = sphi 0, %s113
    %s131 = sphi 0, %s131
    %s133 = sphi 0, %s131
    %s134 = sphi 0, %s133
    %s148 = sphi 0, %s134
    %s152 = sphi 0, %s152
    %s154 = sphi 0, %s152
    %s155 = sphi 0, %s154
    %s169 = sphi 0, %s155
    %s175 = sphi 0, %s177
    %s178 = sphi 0, %s175
    %s179 = sphi 0, %s178
    %s195 = sphi 0, %s179
  $region4: #{basic_block_pallas.1} parent=0 // loop_header_branch
    %16 = sbr.rel (%p14) target = $region8
  $region5: #{basic_block_pallas.1} parent=0 // loop_body
    %s18 = ssub.s32 %s13, 1
    %s19 = ssub.s32 %s13, 2
    %s20 = sadd.s32 %s13, 1
    %s21 = ssub.s32 %s13, %s20
    %p22 = scmp.eq.s32.totalorder %s21, 0
    %s24 = sadd.s32 %s23, 1
    %s25 = scalar_select %p22, %s23, %s24
    %p28 = pneg %p22
    %p29 = scmp.eq.s32.totalorder %s13, 1
    %p30 = por %p28, %p29
    %p31 = scmp.ne.s32.totalorder %s23, %s26
    %p32 = scmp.eq.s32.totalorder %s13, 0
    %p33 = por %p31, %p32
    %p34 = scmp.ne.s32.totalorder %s23, %s26
    %p35 = scmp.eq.s32.totalorder %s18, 1
    %p36 = por %p34, %p35
    %p37 = scmp.ne.s32.totalorder %s26, %s27
    %p38 = scmp.eq.s32.totalorder %s18, 0
    %p39 = por %p37, %p38
    %p40 = scmp.ne.s32.totalorder %s26, %s27
    %p41 = scmp.eq.s32.totalorder %s19, 1
    %p42 = por %p40, %p41
    %p44 = scmp.ne.s32.totalorder %s27, %s43
    %p45 = scmp.eq.s32.totalorder %s19, 0
    %p46 = por %p44, %p45
    %s48 = sadd.s32 %s47, 1
    %p51 = scmp.eq.s32.totalorder %s13, 1
    %p52 = scmp.ne.s32.totalorder %s47, %s49
    %p53 = scmp.eq.s32.totalorder %s13, 0
    %p54 = por %p52, %p53
    %p55 = scmp.ne.s32.totalorder %s47, %s49
    %p56 = scmp.eq.s32.totalorder %s18, 1
    %p57 = por %p55, %p56
    %p58 = scmp.ne.s32.totalorder %s49, %s50
    %p59 = scmp.eq.s32.totalorder %s18, 0
    %p60 = por %p58, %p59
    %p61 = scmp.ne.s32.totalorder %s49, %s50
    %p62 = scmp.eq.s32.totalorder %s19, 1
    %p63 = por %p61, %p62
    %p65 = scmp.ne.s32.totalorder %s50, %s64
    %p66 = scmp.eq.s32.totalorder %s19, 0
    %p67 = por %p65, %p66
    %s69 = sadd.s32 %s68, 1
    %p72 = scmp.eq.s32.totalorder %s13, 1
    %p73 = scmp.ne.s32.totalorder %s68, %s70
    %p74 = scmp.eq.s32.totalorder %s13, 0
    %p75 = por %p73, %p74
    %p76 = scmp.ne.s32.totalorder %s68, %s70
    %p77 = scmp.eq.s32.totalorder %s18, 1
    %p78 = por %p76, %p77
    %p79 = scmp.ne.s32.totalorder %s70, %s71
    %p80 = scmp.eq.s32.totalorder %s18, 0
    %p81 = por %p79, %p80
    %p82 = scmp.ne.s32.totalorder %s70, %s71
    %p83 = scmp.eq.s32.totalorder %s19, 1
    %p84 = por %p82, %p83
    %p86 = scmp.ne.s32.totalorder %s71, %s85
    %p87 = scmp.eq.s32.totalorder %s19, 0
    %p88 = por %p86, %p87
    %s90 = sadd.s32 %s89, 1
    %p93 = scmp.eq.s32.totalorder %s13, 1
    %p94 = scmp.ne.s32.totalorder %s89, %s91
    %p95 = scmp.eq.s32.totalorder %s13, 0
    %p96 = por %p94, %p95
    %p97 = scmp.ne.s32.totalorder %s89, %s91
    %p98 = scmp.eq.s32.totalorder %s18, 1
    %p99 = por %p97, %p98
    %p100 = scmp.ne.s32.totalorder %s91, %s92
    %p101 = scmp.eq.s32.totalorder %s18, 0
    %p102 = por %p100, %p101
    %p103 = scmp.ne.s32.totalorder %s91, %s92
    %p104 = scmp.eq.s32.totalorder %s19, 1
    %p105 = por %p103, %p104
    %p107 = scmp.ne.s32.totalorder %s92, %s106
    %p108 = scmp.eq.s32.totalorder %s19, 0
    %p109 = por %p107, %p108
    %s111 = sadd.s32 %s110, 1
    %p114 = scmp.eq.s32.totalorder %s13, 1
    %p115 = scmp.ne.s32.totalorder %s110, %s112
    %p116 = scmp.eq.s32.totalorder %s13, 0
    %p117 = por %p115, %p116
    %p118 = scmp.ne.s32.totalorder %s110, %s112
    %p119 = scmp.eq.s32.totalorder %s18, 1
    %p120 = por %p118, %p119
    %p121 = scmp.ne.s32.totalorder %s112, %s113
    %p122 = scmp.eq.s32.totalorder %s18, 0
    %p123 = por %p121, %p122
    %p124 = scmp.ne.s32.totalorder %s112, %s113
    %p125 = scmp.eq.s32.totalorder %s19, 1
    %p126 = por %p124, %p125
    %p128 = scmp.ne.s32.totalorder %s113, %s127
    %p129 = scmp.eq.s32.totalorder %s19, 0
    %p130 = por %p128, %p129
    %s132 = sadd.s32 %s131, 1
    %p135 = scmp.eq.s32.totalorder %s13, 1
    %p136 = scmp.ne.s32.totalorder %s131, %s133
    %p137 = scmp.eq.s32.totalorder %s13, 0
    %p138 = por %p136, %p137
    %p139 = scmp.ne.s32.totalorder %s131, %s133
    %p140 = scmp.eq.s32.totalorder %s18, 1
    %p141 = por %p139, %p140
    %p142 = scmp.ne.s32.totalorder %s133, %s134
    %p143 = scmp.eq.s32.totalorder %s18, 0
    %p144 = por %p142, %p143
    %p145 = scmp.ne.s32.totalorder %s133, %s134
    %p146 = scmp.eq.s32.totalorder %s19, 1
    %p147 = por %p145, %p146
    %p149 = scmp.ne.s32.totalorder %s134, %s148
    %p150 = scmp.eq.s32.totalorder %s19, 0
    %p151 = por %p149, %p150
    %s153 = sadd.s32 %s152, 1
    %p156 = scmp.eq.s32.totalorder %s13, 1
    %p157 = scmp.ne.s32.totalorder %s152, %s154
    %p158 = scmp.eq.s32.totalorder %s13, 0
    %p159 = por %p157, %p158
    %p160 = scmp.ne.s32.totalorder %s152, %s154
    %p161 = scmp.eq.s32.totalorder %s18, 1
    %p162 = por %p160, %p161
    %p163 = scmp.ne.s32.totalorder %s154, %s155
    %p164 = scmp.eq.s32.totalorder %s18, 0
    %p165 = por %p163, %p164
    %p166 = scmp.ne.s32.totalorder %s154, %s155
    %p167 = scmp.eq.s32.totalorder %s19, 1
    %p168 = por %p166, %p167
    %p170 = scmp.ne.s32.totalorder %s155, %s169
    %p171 = scmp.eq.s32.totalorder %s19, 0
    %p172 = por %p170, %p171
    %s173 = ssub.s32 %s13, %s20
    %p174 = scmp.eq.s32.totalorder %s173, 0
    %s176 = sadd.s32 %s175, 1
    %s177 = scalar_select %p174, %s175, %s176
    %p180 = pneg %p174
    %p181 = scmp.eq.s32.totalorder %s13, 1
    %p182 = por %p180, %p181
    %p183 = scmp.ne.s32.totalorder %s175, %s178
    %p184 = scmp.eq.s32.totalorder %s13, 0
    %p185 = por %p183, %p184
    %p186 = scmp.ne.s32.totalorder %s175, %s178
    %p187 = scmp.eq.s32.totalorder %s18, 1
    %p188 = por %p186, %p187
    %p189 = scmp.ne.s32.totalorder %s178, %s179
    %p190 = scmp.eq.s32.totalorder %s18, 0
    %p191 = por %p189, %p190
    %p192 = scmp.ne.s32.totalorder %s178, %s179
    %p193 = scmp.eq.s32.totalorder %s19, 1
    %p194 = por %p192, %p193
    %p196 = scmp.ne.s32.totalorder %s179, %s195
    %p197 = scmp.eq.s32.totalorder %s19, 0
    %p198 = por %p196, %p197
    %p199 = scmp.le.s32.totalorder 1, %s13
    %p200 = scmp.lt.s32.totalorder %s13, 3
    %p201 = pnand %p199, %p200
    %p202 = pneg %p201
    // Predicated region
    $region9: #{basic_block_pallas.1} parent=5 // pred_check
      _
    $region10: #{basic_block_pallas.1} parent=5 // pred_check_branch
      %204 = sbr.rel (%p201) target = $region12
    $region11: #{basic_block_pallas.1} parent=5 // pred_region
      %s205 = ssub.s32 %s13, 1
      // Predicated region
      $region13: #{basic_block_pallas.1} parent=11 // pred_check
        %p206 = pneg %p60
      $region14: #{basic_block_pallas.1} parent=11 // pred_check_branch
        %208 = sbr.rel (%p206) target = $region16
      $region15: #{basic_block_pallas.1} parent=11 // pred_region
        _
      $region16: #{basic_block_pallas.1} parent=11 // pred_fallthru
        _
      // Predicated region
      $region17: #{basic_block_pallas.1} parent=11 // pred_check
        %p209 = pneg %p81
      $region18: #{basic_block_pallas.1} parent=11 // pred_check_branch
        %211 = sbr.rel (%p209) target = $region20
      $region19: #{basic_block_pallas.1} parent=11 // pred_region
        _
      $region20: #{basic_block_pallas.1} parent=11 // pred_fallthru
        _
      // Predicated region
      $region21: #{basic_block_pallas.1} parent=11 // pred_check
        %p212 = pneg %p102
      $region22: #{basic_block_pallas.1} parent=11 // pred_check_branch
        %214 = sbr.rel (%p212) target = $region24
      $region23: #{basic_block_pallas.1} parent=11 // pred_region
        _
      $region24: #{basic_block_pallas.1} parent=11 // pred_fallthru
        _
      // Predicated region
      $region25: #{basic_block_pallas.1} parent=11 // pred_check
        %p215 = pneg %p123
      $region26: #{basic_block_pallas.1} parent=11 // pred_check_branch
        %217 = sbr.rel (%p215) target = $region28
      $region27: #{basic_block_pallas.1} parent=11 // pred_region
        _
      $region28: #{basic_block_pallas.1} parent=11 // pred_fallthru
        _
      // Predicated region
      $region29: #{basic_block_pallas.1} parent=11 // pred_check
        %p218 = pneg %p144
      $region30: #{basic_block_pallas.1} parent=11 // pred_check_branch
        %220 = sbr.rel (%p218) target = $region32
      $region31: #{basic_block_pallas.1} parent=11 // pred_region
        _
      $region32: #{basic_block_pallas.1} parent=11 // pred_fallthru
        _
      // Predicated region
      $region33: #{basic_block_pallas.1} parent=11 // pred_check
        %p221 = pneg %p165
      $region34: #{basic_block_pallas.1} parent=11 // pred_check_branch
        %223 = sbr.rel (%p221) target = $region36
      $region35: #{basic_block_pallas.1} parent=11 // pred_region
        _
      $region36: #{basic_block_pallas.1} parent=11 // pred_fallthru
        _
    $region12: #{basic_block_pallas.1} parent=5 // pred_fallthru
      _
    %p224 = scmp.lt.s32.totalorder %s13, 2
    // Predicated region
    $region37: #{basic_block_pallas.1} parent=5 // pred_check
      %p225 = pneg %p224
    $region38: #{basic_block_pallas.1} parent=5 // pred_check_branch
      %227 = sbr.rel (%p225) target = $region40
    $region39: #{basic_block_pallas.1} parent=5 // pred_region
      // Predicated region
      $region41: #{basic_block_pallas.1} parent=39 // pred_check
        %p228 = pneg %p33
      $region42: #{basic_block_pallas.1} parent=39 // pred_check_branch
        %230 = sbr.rel (%p228) target = $region44
      $region43: #{basic_block_pallas.1} parent=39 // pred_region
        %s231 = smul.u32 8, %s13
        %p232 = scmp.lt.s32.totalorder %s231, 15
        %s233 = scalar_select %p232, %s231, 15
        %s234 = smul.addr %s233, 2
        %s235 = smul.addr %s234, 8
        %s236 = scalar_lea.vmem %s0, %s235
        %s237 = smul.u32 8, %s13
      $region44: #{basic_block_pallas.1} parent=39 // pred_fallthru
        _
    $region40: #{basic_block_pallas.1} parent=5 // pred_fallthru
      _
    %p238 = scmp.le.s32.totalorder 1, %s13
    %p239 = scmp.lt.s32.totalorder %s13, 3
    %p240 = pnand %p238, %p239
    %p241 = pneg %p240
    // Predicated region
    $region45: #{basic_block_pallas.1} parent=5 // pred_check
      _
    $region46: #{basic_block_pallas.1} parent=5 // pred_check_branch
      %243 = sbr.rel (%p240) target = $region48
    $region47: #{basic_block_pallas.1} parent=5 // pred_region
      %s244 = ssub.s32 %s13, 1
      %s245 = smul.u32 8, %s18
      %p246 = scmp.lt.s32.totalorder %s245, 15
      %s247 = scalar_select %p246, %s245, 15
      %s248 = smul.addr %s247, 2
      %s249 = smul.addr %s248, 8
      %s250 = scalar_lea.vmem %s0, %s249
      %p251 = pneg %p39
      %p252 = pneg %p36
      %p253 = pneg %p60
      %p254 = pneg %p57
      %p255 = pneg %p81
      %p256 = pneg %p78
      %p257 = pneg %p102
      %p258 = pneg %p99
      %p259 = pneg %p123
      %p260 = pneg %p120
      %p261 = pneg %p144
      %p262 = pneg %p141
      %p263 = pneg %p165
      %p264 = pneg %p162
      %p265 = pneg %p191
      %p266 = pneg %p188
      %s267 = smul.u32 8, %s18
      %p268 = scmp.lt.s32.totalorder %s267, 15
      %s269 = scalar_select %p268, %s267, 15
      %s270 = smul.addr %s269, 2
      %s271 = smul.addr %s270, 8
      %s272 = scalar_lea.vmem %s7, %s271
      %s273 = smul.u32 8, %s18
      %p274 = scmp.lt.s32.totalorder %s273, 15
      %s275 = scalar_select %p274, %s273, 15
      %s276 = smul.addr %s275, 2
      %s277 = smul.addr %s276, 8
      %s278 = scalar_lea.vmem %s0, %s277
      %s279 = smul.u32 8, %s18
      %s280 = smul.u32 8, %s18
      %p281 = scmp.lt.s32.totalorder %s280, 15
      %s282 = scalar_select %p281, %s280, 15
      %s283 = smul.addr %s282, 2
      %s284 = smul.addr %s283, 8
      %s285 = scalar_lea.vmem %s7, %s284
      %s286 = smul.u32 8, %s18
      %287 = vst [vmem:[#allocation2] sm:$0x1] 0.0
      %288 = vst [vmem:[#allocation2 + $0x18] sm:$0x1] 0.0
      %289 = vst [vmem:[#allocation2 + $0x30] sm:$0x1] 0.0
      %290 = vst [vmem:[#allocation2 + $0x48] sm:$0x1] 0.0
      %291 = vst [vmem:[#allocation2 + $0x60] sm:$0x1] 0.0
      %292 = vst [vmem:[#allocation2 + $0x78] sm:$0x1] 0.0
      %293 = vst [vmem:[#allocation2 + $0x90] sm:$0x1] 0.0
      %294 = vst [vmem:[#allocation2 + $0xa8] sm:$0x1] 0.0
      %295 = vst [vmem:[#allocation2 + $0x11] sm:$0x1] 0.0
      %296 = vst [vmem:[#allocation2 + $0x29] sm:$0x1] 0.0
      %297 = vst [vmem:[#allocation2 + $0x41] sm:$0x1] 0.0
      %298 = vst [vmem:[#allocation2 + $0x59] sm:$0x1] 0.0
      %299 = vst [vmem:[#allocation2 + $0x71] sm:$0x1] 0.0
      %300 = vst [vmem:[#allocation2 + $0x89] sm:$0x1] 0.0
      %301 = vst [vmem:[#allocation2 + $0xa1] sm:$0x1] 0.0
      %302 = vst [vmem:[#allocation2 + $0xb9] sm:$0x1] 0.0
      %303 = vst [vmem:[#allocation3] sm:$0x1] 0.0
      %304 = vst [vmem:[#allocation3 + $0x18] sm:$0x1] 0.0
      %305 = vst [vmem:[#allocation3 + $0x30] sm:$0x1] 0.0
      %306 = vst [vmem:[#allocation3 + $0x48] sm:$0x1] 0.0
      %307 = vst [vmem:[#allocation3 + $0x60] sm:$0x1] 0.0
      %308 = vst [vmem:[#allocation3 + $0x78] sm:$0x1] 0.0
      %309 = vst [vmem:[#allocation3 + $0x90] sm:$0x1] 0.0
      %310 = vst [vmem:[#allocation3 + $0xa8] sm:$0x1] 0.0
      %311 = vst [vmem:[#allocation3 + $0x11] sm:$0x1] 0.0
      %312 = vst [vmem:[#allocation3 + $0x29] sm:$0x1] 0.0
      %313 = vst [vmem:[#allocation3 + $0x41] sm:$0x1] 0.0
      %314 = vst [vmem:[#allocation3 + $0x59] sm:$0x1] 0.0
      %315 = vst [vmem:[#allocation3 + $0x71] sm:$0x1] 0.0
      %316 = vst [vmem:[#allocation3 + $0x89] sm:$0x1] 0.0
      %317 = vst [vmem:[#allocation3 + $0xa1] sm:$0x1] 0.0
      %318 = vst [vmem:[#allocation3 + $0xb9] sm:$0x1] 0.0
      %v319 = vld [vmem:[%s278] sm:$0xff]
      %v320 = vld [vmem:[%s278 + $0x8] sm:$0xff]
      %v321 = vld [vmem:[%s278 + $0x10] sm:$0xff]
      %v322 = vld [vmem:[%s278 + $0x18] sm:$0xff]
      %v323 = vld [vmem:[%s278 + $0x20] sm:$0xff]
      %v324 = vld [vmem:[%s278 + $0x28] sm:$0xff]
      %v325 = vld [vmem:[%s278 + $0x30] sm:$0xff]
      %v326 = vld [vmem:[%s278 + $0x38] sm:$0xff]
      %v327 = vld [vmem:[%s278 + $0x40] sm:$0xff]
      %v328 = vld [vmem:[%s278 + $0x48] sm:$0xff]
      %v329 = vld [vmem:[%s278 + $0x50] sm:$0xff]
      %v330 = vld [vmem:[%s278 + $0x58] sm:$0xff]
      %v331 = vld [vmem:[%s278 + $0x60] sm:$0xff]
      %v332 = vld [vmem:[%s278 + $0x68] sm:$0xff]
      %v333 = vld [vmem:[%s278 + $0x70] sm:$0xff]
      %v334 = vld [vmem:[%s278 + $0x78] sm:$0xff]
      %335 = vst [vmem:[#allocation2 + $0x1] sm:$0xff] %v319
      %336 = vst [vmem:[#allocation2 + $0x9] sm:$0xff] %v320
      %337 = vst [vmem:[#allocation2 + $0x19] sm:$0xff] %v321
      %338 = vst [vmem:[#allocation2 + $0x21] sm:$0xff] %v322
      %339 = vst [vmem:[#allocation2 + $0x31] sm:$0xff] %v323
      %340 = vst [vmem:[#allocation2 + $0x39] sm:$0xff] %v324
      %341 = vst [vmem:[#allocation2 + $0x49] sm:$0xff] %v325
      %342 = vst [vmem:[#allocation2 + $0x51] sm:$0xff] %v326
      %343 = vst [vmem:[#allocation2 + $0x61] sm:$0xff] %v327
      %344 = vst [vmem:[#allocation2 + $0x69] sm:$0xff] %v328
      %345 = vst [vmem:[#allocation2 + $0x79] sm:$0xff] %v329
      %346 = vst [vmem:[#allocation2 + $0x81] sm:$0xff] %v330
      %347 = vst [vmem:[#allocation2 + $0x91] sm:$0xff] %v331
      %348 = vst [vmem:[#allocation2 + $0x99] sm:$0xff] %v332
      %349 = vst [vmem:[#allocation2 + $0xa9] sm:$0xff] %v333
      %350 = vst [vmem:[#allocation2 + $0xb1] sm:$0xff] %v334
      %v351 = vld [vmem:[#allocation2] sm:$0xff]
      %v352 = vld [vmem:[#allocation2 + $0x8] sm:$0xff]
      %v353 = vld [vmem:[#allocation2 + $0x18] sm:$0xff]
      %v354 = vld [vmem:[#allocation2 + $0x20] sm:$0xff]
      %v355 = vld [vmem:[#allocation2 + $0x30] sm:$0xff]
      %v356 = vld [vmem:[#allocation2 + $0x38] sm:$0xff]
      %v357 = vld [vmem:[#allocation2 + $0x48] sm:$0xff]
      %v358 = vld [vmem:[#allocation2 + $0x50] sm:$0xff]
      %v359 = vld [vmem:[#allocation2 + $0x60] sm:$0xff]
      %v360 = vld [vmem:[#allocation2 + $0x68] sm:$0xff]
      %v361 = vld [vmem:[#allocation2 + $0x78] sm:$0xff]
      %v362 = vld [vmem:[#allocation2 + $0x80] sm:$0xff]
      %v363 = vld [vmem:[#allocation2 + $0x90] sm:$0xff]
      %v364 = vld [vmem:[#allocation2 + $0x98] sm:$0xff]
      %v365 = vld [vmem:[#allocation2 + $0xa8] sm:$0xff]
      %v366 = vld [vmem:[#allocation2 + $0xb0] sm:$0xff]
      %v367 = vpack.c.bf16 %v351, %v351
      %v368 = vpack.c.bf16 %v352, %v352
      %v369 = vpack.c.bf16 %v353, %v353
      %v370 = vpack.c.bf16 %v354, %v354
      %v371 = vpack.c.bf16 %v355, %v355
      %v372 = vpack.c.bf16 %v356, %v356
      %v373 = vpack.c.bf16 %v357, %v357
      %v374 = vpack.c.bf16 %v358, %v358
      %v375 = vpack.c.bf16 %v359, %v359
      %v376 = vpack.c.bf16 %v360, %v360
      %v377 = vpack.c.bf16 %v361, %v361
      %v378 = vpack.c.bf16 %v362, %v362
      %v379 = vpack.c.bf16 %v363, %v363
      %v380 = vpack.c.bf16 %v364, %v364
      %v381 = vpack.c.bf16 %v365, %v365
      %v382 = vpack.c.bf16 %v366, %v366
      %383 = vst [vmem:[#allocation4] sm:$0xf] %v367
      %384 = vst [vmem:[#allocation4 + $0xc] sm:$0xf] %v368
      %385 = vst [vmem:[#allocation4 + $0x18] sm:$0xf] %v369
      %386 = vst [vmem:[#allocation4 + $0x24] sm:$0xf] %v370
      %387 = vst [vmem:[#allocation4 + $0x30] sm:$0xf] %v371
      %388 = vst [vmem:[#allocation4 + $0x3c] sm:$0xf] %v372
      %389 = vst [vmem:[#allocation4 + $0x48] sm:$0xf] %v373
      %390 = vst [vmem:[#allocation4 + $0x54] sm:$0xf] %v374
      %391 = vst [vmem:[#allocation4 + $0x60] sm:$0xf] %v375
      %392 = vst [vmem:[#allocation4 + $0x6c] sm:$0xf] %v376
      %393 = vst [vmem:[#allocation4 + $0x78] sm:$0xf] %v377
      %394 = vst [vmem:[#allocation4 + $0x84] sm:$0xf] %v378
      %395 = vst [vmem:[#allocation4 + $0x90] sm:$0xf] %v379
      %396 = vst [vmem:[#allocation4 + $0x9c] sm:$0xf] %v380
      %397 = vst [vmem:[#allocation4 + $0xa8] sm:$0xf] %v381
      %398 = vst [vmem:[#allocation4 + $0xb4] sm:$0xf] %v382
      %v399 = vld [vmem:[#allocation2 + $0x1] sm:$0xff]
      %v400 = vld [vmem:[#allocation2 + $0x9] sm:$0xff]
      %v401 = vld [vmem:[#allocation2 + $0x19] sm:$0xff]
      %v402 = vld [vmem:[#allocation2 + $0x21] sm:$0xff]
      %v403 = vld [vmem:[#allocation2 + $0x31] sm:$0xff]
      %v404 = vld [vmem:[#allocation2 + $0x39] sm:$0xff]
      %v405 = vld [vmem:[#allocation2 + $0x49] sm:$0xff]
      %v406 = vld [vmem:[#allocation2 + $0x51] sm:$0xff]
      %v407 = vld [vmem:[#allocation2 + $0x61] sm:$0xff]
      %v408 = vld [vmem:[#allocation2 + $0x69] sm:$0xff]
      %v409 = vld [vmem:[#allocation2 + $0x79] sm:$0xff]
      %v410 = vld [vmem:[#allocation2 + $0x81] sm:$0xff]
      %v411 = vld [vmem:[#allocation2 + $0x91] sm:$0xff]
      %v412 = vld [vmem:[#allocation2 + $0x99] sm:$0xff]
      %v413 = vld [vmem:[#allocation2 + $0xa9] sm:$0xff]
      %v414 = vld [vmem:[#allocation2 + $0xb1] sm:$0xff]
      %v415 = vpack.c.bf16 %v399, %v399
      %v416 = vpack.c.bf16 %v400, %v400
      %v417 = vpack.c.bf16 %v401, %v401
      %v418 = vpack.c.bf16 %v402, %v402
      %v419 = vpack.c.bf16 %v403, %v403
      %v420 = vpack.c.bf16 %v404, %v404
      %v421 = vpack.c.bf16 %v405, %v405
      %v422 = vpack.c.bf16 %v406, %v406
      %v423 = vpack.c.bf16 %v407, %v407
      %v424 = vpack.c.bf16 %v408, %v408
      %v425 = vpack.c.bf16 %v409, %v409
      %v426 = vpack.c.bf16 %v410, %v410
      %v427 = vpack.c.bf16 %v411, %v411
      %v428 = vpack.c.bf16 %v412, %v412
      %v429 = vpack.c.bf16 %v413, %v413
      %v430 = vpack.c.bf16 %v414, %v414
      %431 = vst [vmem:[#allocation4 + $0x4] sm:$0xf] %v415
      %432 = vst [vmem:[#allocation4 + $0x10] sm:$0xf] %v416
      %433 = vst [vmem:[#allocation4 + $0x1c] sm:$0xf] %v417
      %434 = vst [vmem:[#allocation4 + $0x28] sm:$0xf] %v418
      %435 = vst [vmem:[#allocation4 + $0x34] sm:$0xf] %v419
      %436 = vst [vmem:[#allocation4 + $0x40] sm:$0xf] %v420
      %437 = vst [vmem:[#allocation4 + $0x4c] sm:$0xf] %v421
      %438 = vst [vmem:[#allocation4 + $0x58] sm:$0xf] %v422
      %439 = vst [vmem:[#allocation4 + $0x64] sm:$0xf] %v423
      %440 = vst [vmem:[#allocation4 + $0x70] sm:$0xf] %v424
      %441 = vst [vmem:[#allocation4 + $0x7c] sm:$0xf] %v425
      %442 = vst [vmem:[#allocation4 + $0x88] sm:$0xf] %v426
      %443 = vst [vmem:[#allocation4 + $0x94] sm:$0xf] %v427
      %444 = vst [vmem:[#allocation4 + $0xa0] sm:$0xf] %v428
      %445 = vst [vmem:[#allocation4 + $0xac] sm:$0xf] %v429
      %446 = vst [vmem:[#allocation4 + $0xb8] sm:$0xf] %v430
      %v447 = vld [vmem:[#allocation2 + $0x2] sm:$0xff]
      %v448 = vld [vmem:[#allocation2 + $0xa] sm:$0xff]
      %v449 = vld [vmem:[#allocation2 + $0x1a] sm:$0xff]
      %v450 = vld [vmem:[#allocation2 + $0x22] sm:$0xff]
      %v451 = vld [vmem:[#allocation2 + $0x32] sm:$0xff]
      %v452 = vld [vmem:[#allocation2 + $0x3a] sm:$0xff]
      %v453 = vld [vmem:[#allocation2 + $0x4a] sm:$0xff]
      %v454 = vld [vmem:[#allocation2 + $0x52] sm:$0xff]
      %v455 = vld [vmem:[#allocation2 + $0x62] sm:$0xff]
      %v456 = vld [vmem:[#allocation2 + $0x6a] sm:$0xff]
      %v457 = vld [vmem:[#allocation2 + $0x7a] sm:$0xff]
      %v458 = vld [vmem:[#allocation2 + $0x82] sm:$0xff]
      %v459 = vld [vmem:[#allocation2 + $0x92] sm:$0xff]
      %v460 = vld [vmem:[#allocation2 + $0x9a] sm:$0xff]
      %v461 = vld [vmem:[#allocation2 + $0xaa] sm:$0xff]
      %v462 = vld [vmem:[#allocation2 + $0xb2] sm:$0xff]
      %v463 = vpack.c.bf16 %v447, %v447
      %v464 = vpack.c.bf16 %v448, %v448
      %v465 = vpack.c.bf16 %v449, %v449
      %v466 = vpack.c.bf16 %v450, %v450
      %v467 = vpack.c.bf16 %v451, %v451
      %v468 = vpack.c.bf16 %v452, %v452
      %v469 = vpack.c.bf16 %v453, %v453
      %v470 = vpack.c.bf16 %v454, %v454
      %v471 = vpack.c.bf16 %v455, %v455
      %v472 = vpack.c.bf16 %v456, %v456
      %v473 = vpack.c.bf16 %v457, %v457
      %v474 = vpack.c.bf16 %v458, %v458
      %v475 = vpack.c.bf16 %v459, %v459
      %v476 = vpack.c.bf16 %v460, %v460
      %v477 = vpack.c.bf16 %v461, %v461
      %v478 = vpack.c.bf16 %v462, %v462
      %479 = vst [vmem:[#allocation4 + $0x8] sm:$0xf] %v463
      %480 = vst [vmem:[#allocation4 + $0x14] sm:$0xf] %v464
      %481 = vst [vmem:[#allocation4 + $0x20] sm:$0xf] %v465
      %482 = vst [vmem:[#allocation4 + $0x2c] sm:$0xf] %v466
      %483 = vst [vmem:[#allocation4 + $0x38] sm:$0xf] %v467
      %484 = vst [vmem:[#allocation4 + $0x44] sm:$0xf] %v468
      %485 = vst [vmem:[#allocation4 + $0x50] sm:$0xf] %v469
      %486 = vst [vmem:[#allocation4 + $0x5c] sm:$0xf] %v470
      %487 = vst [vmem:[#allocation4 + $0x68] sm:$0xf] %v471
      %488 = vst [vmem:[#allocation4 + $0x74] sm:$0xf] %v472
      %489 = vst [vmem:[#allocation4 + $0x80] sm:$0xf] %v473
      %490 = vst [vmem:[#allocation4 + $0x8c] sm:$0xf] %v474
      %491 = vst [vmem:[#allocation4 + $0x98] sm:$0xf] %v475
      %492 = vst [vmem:[#allocation4 + $0xa4] sm:$0xf] %v476
      %493 = vst [vmem:[#allocation4 + $0xb0] sm:$0xf] %v477
      %494 = vst [vmem:[#allocation4 + $0xbc] sm:$0xf] %v478
      %v495 = vld [vmem:[#allocation4] sm:$0xff]
      %v496 = vld [vmem:[#allocation4 + $0x8] sm:$0xf]
      %v497 = vld [vmem:[#allocation4 + $0xc] sm:$0xff]
      %v498 = vld [vmem:[#allocation4 + $0x14] sm:$0xf]
      %v499 = vld [vmem:[#allocation4 + $0x18] sm:$0xff]
      %v500 = vld [vmem:[#allocation4 + $0x20] sm:$0xf]
      %v501 = vld [vmem:[#allocation4 + $0x24] sm:$0xff]
      %v502 = vld [vmem:[#allocation4 + $0x2c] sm:$0xf]
      %v503 = vld [vmem:[#allocation4 + $0x30] sm:$0xff]
      %v504 = vld [vmem:[#allocation4 + $0x38] sm:$0xf]
      %v505 = vld [vmem:[#allocation4 + $0x3c] sm:$0xff]
      %v506 = vld [vmem:[#allocation4 + $0x44] sm:$0xf]
      %v507 = vld [vmem:[#allocation4 + $0x48] sm:$0xff]
      %v508 = vld [vmem:[#allocation4 + $0x50] sm:$0xf]
      %v509 = vld [vmem:[#allocation4 + $0x54] sm:$0xff]
      %v510 = vld [vmem:[#allocation4 + $0x5c] sm:$0xf]
      %v511 = vld [vmem:[#allocation4 + $0x60] sm:$0xff]
      %v512 = vld [vmem:[#allocation4 + $0x68] sm:$0xf]
      %v513 = vld [vmem:[#allocation4 + $0x6c] sm:$0xff]
      %v514 = vld [vmem:[#allocation4 + $0x74] sm:$0xf]
      %v515 = vld [vmem:[#allocation4 + $0x78] sm:$0xff]
      %v516 = vld [vmem:[#allocation4 + $0x80] sm:$0xf]
      %v517 = vld [vmem:[#allocation4 + $0x84] sm:$0xff]
      %v518 = vld [vmem:[#allocation4 + $0x8c] sm:$0xf]
      %v519 = vld [vmem:[#allocation4 + $0x90] sm:$0xff]
      %v520 = vld [vmem:[#allocation4 + $0x98] sm:$0xf]
      %v521 = vld [vmem:[#allocation4 + $0x9c] sm:$0xff]
      %v522 = vld [vmem:[#allocation4 + $0xa4] sm:$0xf]
      %v523 = vld [vmem:[#allocation4 + $0xa8] sm:$0xff]
      %v524 = vld [vmem:[#allocation4 + $0xb0] sm:$0xf]
      %v525 = vld [vmem:[#allocation4 + $0xb4] sm:$0xff]
      %v526 = vld [vmem:[#allocation4 + $0xbc] sm:$0xf]
      %v527 = vld [vmem:[%s1] sm:$0xf]
      %v528 = vld [vmem:[%s1 + $0x4] sm:$0xf]
      %v529 = vld [vmem:[%s1 + $0x8] sm:$0xf]
      %v530 = vld [vmem:[%s1 + $0xc] sm:$0xf]
      %v531 = vld [vmem:[%s1 + $0x10] sm:$0xf]
      %v532 = vld [vmem:[%s1 + $0x14] sm:$0xf]
      %v533 = vld [vmem:[%s1 + $0x18] sm:$0xf]
      %v534 = vld [vmem:[%s1 + $0x1c] sm:$0xf]
      %v535 = vld [vmem:[%s1 + $0x20] sm:$0xf]
      %v536 = vld [vmem:[%s1 + $0x24] sm:$0xf]
      %v537 = vld [vmem:[%s1 + $0x28] sm:$0xf]
      %v538 = vld [vmem:[%s1 + $0x2c] sm:$0xf]
      %v539 = vld [vmem:[%s1 + $0x30] sm:$0xf]
      %v540 = vld [vmem:[%s1 + $0x34] sm:$0xf]
      %v541 = vld [vmem:[%s1 + $0x38] sm:$0xf]
      %v542 = vld [vmem:[%s1 + $0x3c] sm:$0xf]
      %v543 = vld [vmem:[%s1 + $0x40] sm:$0xf]
      %v544 = vld [vmem:[%s1 + $0x44] sm:$0xf]
      %v545 = vld [vmem:[%s1 + $0x48] sm:$0xf]
      %v546 = vld [vmem:[%s1 + $0x4c] sm:$0xf]
      %v547 = vld [vmem:[%s1 + $0x50] sm:$0xf]
      %v548 = vld [vmem:[%s1 + $0x54] sm:$0xf]
      %v549 = vld [vmem:[%s1 + $0x58] sm:$0xf]
      %v550 = vld [vmem:[%s1 + $0x5c] sm:$0xf]
      %v551 = vld [vmem:[%s1 + $0x60] sm:$0xf]
      %v552 = vld [vmem:[%s1 + $0x64] sm:$0xf]
      %v553 = vld [vmem:[%s1 + $0x68] sm:$0xf]
      %v554 = vld [vmem:[%s1 + $0x6c] sm:$0xf]
      %v555 = vld [vmem:[%s1 + $0x70] sm:$0xf]
      %v556 = vld [vmem:[%s1 + $0x74] sm:$0xf]
      %v557 = vld [vmem:[%s1 + $0x78] sm:$0xf]
      %v558 = vld [vmem:[%s1 + $0x7c] sm:$0xf]
      %v559 = vld [vmem:[%s1 + $0x80] sm:$0xf]
      %v560 = vld [vmem:[%s1 + $0x84] sm:$0xf]
      %v561 = vld [vmem:[%s1 + $0x88] sm:$0xf]
      %v562 = vld [vmem:[%s1 + $0x8c] sm:$0xf]
      %v563 = vld [vmem:[%s1 + $0x90] sm:$0xf]
      %v564 = vld [vmem:[%s1 + $0x94] sm:$0xf]
      %v565 = vld [vmem:[%s1 + $0x98] sm:$0xf]
      %v566 = vld [vmem:[%s1 + $0x9c] sm:$0xf]
      %v567 = vld [vmem:[%s1 + $0xa0] sm:$0xf]
      %v568 = vld [vmem:[%s1 + $0xa4] sm:$0xf]
      %v569 = vld [vmem:[%s1 + $0xa8] sm:$0xf]
      %v570 = vld [vmem:[%s1 + $0xac] sm:$0xf]
      %v571 = vld [vmem:[%s1 + $0xb0] sm:$0xf]
      %v572 = vld [vmem:[%s1 + $0xb4] sm:$0xf]
      %v573 = vld [vmem:[%s1 + $0xb8] sm:$0xf]
      %v574 = vld [vmem:[%s1 + $0xbc] sm:$0xf]
      %v607 = vunpack.c.l.b16 %v495
      %v608 = vunpack.c.h.b16 %v495
      %v609 = vunpack.c.l.b16 %v496
      %v610 = vunpack.c.l.b16 %v497
      %v611 = vunpack.c.h.b16 %v497
      %v612 = vunpack.c.l.b16 %v498
      %v613 = vunpack.c.l.b16 %v499
      %v614 = vunpack.c.h.b16 %v499
      %v615 = vunpack.c.l.b16 %v500
      %v616 = vunpack.c.l.b16 %v501
      %v617 = vunpack.c.h.b16 %v501
      %v618 = vunpack.c.l.b16 %v502
      %v619 = vunpack.c.l.b16 %v503
      %v620 = vunpack.c.h.b16 %v503
      %v621 = vunpack.c.l.b16 %v504
      %v622 = vunpack.c.l.b16 %v505
      %v623 = vunpack.c.h.b16 %v505
      %v624 = vunpack.c.l.b16 %v506
      %v625 = vunpack.c.l.b16 %v507
      %v626 = vunpack.c.h.b16 %v507
      %v627 = vunpack.c.l.b16 %v508
      %v628 = vunpack.c.l.b16 %v509
      %v629 = vunpack.c.h.b16 %v509
      %v630 = vunpack.c.l.b16 %v510
      %v631 = vunpack.c.l.b16 %v511
      %v632 = vunpack.c.h.b16 %v511
      %v633 = vunpack.c.l.b16 %v512
      %v634 = vunpack.c.l.b16 %v513
      %v635 = vunpack.c.h.b16 %v513
      %v636 = vunpack.c.l.b16 %v514
      %v637 = vunpack.c.l.b16 %v515
      %v638 = vunpack.c.h.b16 %v515
      %v639 = vunpack.c.l.b16 %v516
      %v640 = vunpack.c.l.b16 %v517
      %v641 = vunpack.c.h.b16 %v517
      %v642 = vunpack.c.l.b16 %v518
      %v643 = vunpack.c.l.b16 %v519
      %v644 = vunpack.c.h.b16 %v519
      %v645 = vunpack.c.l.b16 %v520
      %v646 = vunpack.c.l.b16 %v521
      %v647 = vunpack.c.h.b16 %v521
      %v648 = vunpack.c.l.b16 %v522
      %v649 = vunpack.c.l.b16 %v523
      %v650 = vunpack.c.h.b16 %v523
      %v651 = vunpack.c.l.b16 %v524
      %v652 = vunpack.c.l.b16 %v525
      %v653 = vunpack.c.h.b16 %v525
      %v654 = vunpack.c.l.b16 %v526
      %v655 = vpack.c.b16 %v610, %v607
      %v656 = vpack.c.b16 %v611, %v608
      %v657 = vpack.c.b16 %v612, %v609
      %v658 = vpack.c.b16 %v616, %v613
      %v659 = vpack.c.b16 %v617, %v614
      %v660 = vpack.c.b16 %v618, %v615
      %v661 = vpack.c.b16 %v622, %v619
      %v662 = vpack.c.b16 %v623, %v620
      %v663 = vpack.c.b16 %v624, %v621
      %v664 = vpack.c.b16 %v628, %v625
      %v665 = vpack.c.b16 %v629, %v626
      %v666 = vpack.c.b16 %v630, %v627
      %v667 = vpack.c.b16 %v634, %v631
      %v668 = vpack.c.b16 %v635, %v632
      %v669 = vpack.c.b16 %v636, %v633
      %v670 = vpack.c.b16 %v640, %v637
      %v671 = vpack.c.b16 %v641, %v638
      %v672 = vpack.c.b16 %v642, %v639
      %v673 = vpack.c.b16 %v646, %v643
      %v674 = vpack.c.b16 %v647, %v644
      %v675 = vpack.c.b16 %v648, %v645
      %v676 = vpack.c.b16 %v652, %v649
      %v677 = vpack.c.b16 %v653, %v650
      %v678 = vpack.c.b16 %v654, %v651
      %v751 = vunpack.c.l.b16 %v527
      %v752 = vunpack.c.l.b16 %v528
      %v753 = vunpack.c.l.b16 %v529
      %v754 = vunpack.c.l.b16 %v530
      %v755 = vunpack.c.l.b16 %v531
      %v756 = vunpack.c.l.b16 %v532
      %v757 = vunpack.c.l.b16 %v533
      %v758 = vunpack.c.l.b16 %v534
      %v759 = vunpack.c.l.b16 %v535
      %v760 = vunpack.c.l.b16 %v536
      %v761 = vunpack.c.l.b16 %v537
      %v762 = vunpack.c.l.b16 %v538
      %v763 = vunpack.c.l.b16 %v539
      %v764 = vunpack.c.l.b16 %v540
      %v765 = vunpack.c.l.b16 %v541
      %v766 = vunpack.c.l.b16 %v542
      %v767 = vunpack.c.l.b16 %v543
      %v768 = vunpack.c.l.b16 %v544
      %v769 = vunpack.c.l.b16 %v545
      %v770 = vunpack.c.l.b16 %v546
      %v771 = vunpack.c.l.b16 %v547
      %v772 = vunpack.c.l.b16 %v548
      %v773 = vunpack.c.l.b16 %v549
      %v774 = vunpack.c.l.b16 %v550
      %v775 = vunpack.c.l.b16 %v551
      %v776 = vunpack.c.l.b16 %v552
      %v777 = vunpack.c.l.b16 %v553
      %v778 = vunpack.c.l.b16 %v554
      %v779 = vunpack.c.l.b16 %v555
      %v780 = vunpack.c.l.b16 %v556
      %v781 = vunpack.c.l.b16 %v557
      %v782 = vunpack.c.l.b16 %v558
      %v783 = vunpack.c.l.b16 %v559
      %v784 = vunpack.c.l.b16 %v560
      %v785 = vunpack.c.l.b16 %v561
      %v786 = vunpack.c.l.b16 %v562
      %v787 = vunpack.c.l.b16 %v563
      %v788 = vunpack.c.l.b16 %v564
      %v789 = vunpack.c.l.b16 %v565
      %v790 = vunpack.c.l.b16 %v566
      %v791 = vunpack.c.l.b16 %v567
      %v792 = vunpack.c.l.b16 %v568
      %v793 = vunpack.c.l.b16 %v569
      %v794 = vunpack.c.l.b16 %v570
      %v795 = vunpack.c.l.b16 %v571
      %v796 = vunpack.c.l.b16 %v572
      %v797 = vunpack.c.l.b16 %v573
      %v798 = vunpack.c.l.b16 %v574
      %v799 = vpack.c.b16 %v752, %v751
      %v800 = vpack.c.b16 %v754, %v753
      %v801 = vpack.c.b16 %v756, %v755
      %v802 = vpack.c.b16 %v758, %v757
      %v803 = vpack.c.b16 %v760, %v759
      %v804 = vpack.c.b16 %v762, %v761
      %v805 = vpack.c.b16 %v764, %v763
      %v806 = vpack.c.b16 %v766, %v765
      %v807 = vpack.c.b16 %v768, %v767
      %v808 = vpack.c.b16 %v770, %v769
      %v809 = vpack.c.b16 %v772, %v771
      %v810 = vpack.c.b16 %v774, %v773
      %v811 = vpack.c.b16 %v776, %v775
      %v812 = vpack.c.b16 %v778, %v777
      %v813 = vpack.c.b16 %v780, %v779
      %v814 = vpack.c.b16 %v782, %v781
      %v815 = vpack.c.b16 %v784, %v783
      %v816 = vpack.c.b16 %v786, %v785
      %v817 = vpack.c.b16 %v788, %v787
      %v818 = vpack.c.b16 %v790, %v789
      %v819 = vpack.c.b16 %v792, %v791
      %v820 = vpack.c.b16 %v794, %v793
      %v821 = vpack.c.b16 %v796, %v795
      %v822 = vpack.c.b16 %v798, %v797
      %847 = vmatpush.bf16.msra.mxu0 %v806
      %848 = vmatpush.bf16.msra.mxu0 %v805
      %849 = vmatpush.bf16.msra.mxu0 %v804
      %850 = vmatpush.bf16.msra.mxu0 %v803
      %851 = vmatpush.bf16.msra.mxu0 %v802
      %852 = vmatpush.bf16.msra.mxu0 %v801
      %853 = vmatpush.bf16.msra.mxu0 %v800
      %854 = vmatpush.bf16.msra.mxu0 %v799
      %855 = vmatmul.bf16.gmra.mxu0 %v655
      %v856 = vpop.f32.mrf.mxu0
      %v857 = vadd.f32 0.0, %v856
      %v858 = vpop.f32.mrf.mxu0
      %v859 = vadd.f32 0.0, %v858
      %860 = vmatmul.bf16.gmra.mxu0 %v658
      %v861 = vpop.f32.mrf.mxu0
      %v862 = vadd.f32 0.0, %v861
      %v863 = vpop.f32.mrf.mxu0
      %v864 = vadd.f32 0.0, %v863
      %865 = vmatmul.bf16.gmra.mxu0 %v661
      %v866 = vpop.f32.mrf.mxu0
      %v867 = vadd.f32 0.0, %v866
      %v868 = vpop.f32.mrf.mxu0
      %v869 = vadd.f32 0.0, %v868
      %870 = vmatmul.bf16.gmra.mxu0 %v664
      %v871 = vpop.f32.mrf.mxu0
      %v872 = vadd.f32 0.0, %v871
      %v873 = vpop.f32.mrf.mxu0
      %v874 = vadd.f32 0.0, %v873
      %875 = vmatmul.bf16.gmra.mxu0 %v667
      %v876 = vpop.f32.mrf.mxu0
      %v877 = vadd.f32 0.0, %v876
      %v878 = vpop.f32.mrf.mxu0
      %v879 = vadd.f32 0.0, %v878
      %880 = vmatmul.bf16.gmra.mxu0 %v670
      %v881 = vpop.f32.mrf.mxu0
      %v882 = vadd.f32 0.0, %v881
      %v883 = vpop.f32.mrf.mxu0
      %v884 = vadd.f32 0.0, %v883
      %885 = vmatmul.bf16.gmra.mxu0 %v673
      %v886 = vpop.f32.mrf.mxu0
      %v887 = vadd.f32 0.0, %v886
      %v888 = vpop.f32.mrf.mxu0
      %v889 = vadd.f32 0.0, %v888
      %890 = vmatmul.bf16.gmra.mxu0 %v676
      %v891 = vpop.f32.mrf.mxu0
      %v892 = vadd.f32 0.0, %v891
      %v893 = vpop.f32.mrf.mxu0
      %v894 = vadd.f32 0.0, %v893
      %895 = vdwg.mxu0
      %896 = vmatpush.bf16.msra.mxu0 %v814
      %897 = vmatpush.bf16.msra.mxu0 %v813
      %898 = vmatpush.bf16.msra.mxu0 %v812
      %899 = vmatpush.bf16.msra.mxu0 %v811
      %900 = vmatpush.bf16.msra.mxu0 %v810
      %901 = vmatpush.bf16.msra.mxu0 %v809
      %902 = vmatpush.bf16.msra.mxu0 %v808
      %903 = vmatpush.bf16.msra.mxu0 %v807
      %904 = vmatmul.bf16.gmra.mxu0 %v656
      %v905 = vpop.f32.mrf.mxu0
      %v906 = vadd.f32 %v857, %v905
      %v907 = vpop.f32.mrf.mxu0
      %v908 = vadd.f32 %v859, %v907
      %909 = vmatmul.bf16.gmra.mxu0 %v659
      %v910 = vpop.f32.mrf.mxu0
      %v911 = vadd.f32 %v862, %v910
      %v912 = vpop.f32.mrf.mxu0
      %v913 = vadd.f32 %v864, %v912
      %914 = vmatmul.bf16.gmra.mxu0 %v662
      %v915 = vpop.f32.mrf.mxu0
      %v916 = vadd.f32 %v867, %v915
      %v917 = vpop.f32.mrf.mxu0
      %v918 = vadd.f32 %v869, %v917
      %919 = vmatmul.bf16.gmra.mxu0 %v665
      %v920 = vpop.f32.mrf.mxu0
      %v921 = vadd.f32 %v872, %v920
      %v922 = vpop.f32.mrf.mxu0
      %v923 = vadd.f32 %v874, %v922
      %924 = vmatmul.bf16.gmra.mxu0 %v668
      %v925 = vpop.f32.mrf.mxu0
      %v926 = vadd.f32 %v877, %v925
      %v927 = vpop.f32.mrf.mxu0
      %v928 = vadd.f32 %v879, %v927
      %929 = vmatmul.bf16.gmra.mxu0 %v671
      %v930 = vpop.f32.mrf.mxu0
      %v931 = vadd.f32 %v882, %v930
      %v932 = vpop.f32.mrf.mxu0
      %v933 = vadd.f32 %v884, %v932
      %934 = vmatmul.bf16.gmra.mxu0 %v674
      %v935 = vpop.f32.mrf.mxu0
      %v936 = vadd.f32 %v887, %v935
      %v937 = vpop.f32.mrf.mxu0
      %v938 = vadd.f32 %v889, %v937
      %939 = vmatmul.bf16.gmra.mxu0 %v677
      %v940 = vpop.f32.mrf.mxu0
      %v941 = vadd.f32 %v892, %v940
      %v942 = vpop.f32.mrf.mxu0
      %v943 = vadd.f32 %v894, %v942
      %944 = vdwg.mxu0
      %945 = vmatpush.bf16.msra.mxu0 %v822
      %946 = vmatpush.bf16.msra.mxu0 %v821
      %947 = vmatpush.bf16.msra.mxu0 %v820
      %948 = vmatpush.bf16.msra.mxu0 %v819
      %949 = vmatpush.bf16.msra.mxu0 %v818
      %950 = vmatpush.bf16.msra.mxu0 %v817
      %951 = vmatpush.bf16.msra.mxu0 %v816
      %952 = vmatpush.bf16.msra.mxu0 %v815
      %953 = vmatmul.bf16.gmra.mxu0 %v657
      %v954 = vpop.f32.mrf.mxu0
      %v955 = vadd.f32 %v906, %v954
      %v956 = vpop.f32.mrf.mxu0
      %v957 = vadd.f32 %v908, %v956
      %958 = vmatmul.bf16.gmra.mxu0 %v660
      %v959 = vpop.f32.mrf.mxu0
      %v960 = vadd.f32 %v911, %v959
      %v961 = vpop.f32.mrf.mxu0
      %v962 = vadd.f32 %v913, %v961
      %963 = vmatmul.bf16.gmra.mxu0 %v663
      %v964 = vpop.f32.mrf.mxu0
      %v965 = vadd.f32 %v916, %v964
      %v966 = vpop.f32.mrf.mxu0
      %v967 = vadd.f32 %v918, %v966
      %968 = vmatmul.bf16.gmra.mxu0 %v666
      %v969 = vpop.f32.mrf.mxu0
      %v970 = vadd.f32 %v921, %v969
      %v971 = vpop.f32.mrf.mxu0
      %v972 = vadd.f32 %v923, %v971
      %973 = vmatmul.bf16.gmra.mxu0 %v669
      %v974 = vpop.f32.mrf.mxu0
      %v975 = vadd.f32 %v926, %v974
      %v976 = vpop.f32.mrf.mxu0
      %v977 = vadd.f32 %v928, %v976
      %978 = vmatmul.bf16.gmra.mxu0 %v672
      %v979 = vpop.f32.mrf.mxu0
      %v980 = vadd.f32 %v931, %v979
      %v981 = vpop.f32.mrf.mxu0
      %v982 = vadd.f32 %v933, %v981
      %983 = vmatmul.bf16.gmra.mxu0 %v675
      %v984 = vpop.f32.mrf.mxu0
      %v985 = vadd.f32 %v936, %v984
      %v986 = vpop.f32.mrf.mxu0
      %v987 = vadd.f32 %v938, %v986
      %988 = vmatmul.bf16.gmra.mxu0 %v678
      %v989 = vpop.f32.mrf.mxu0
      %v990 = vadd.f32 %v941, %v989
      %v991 = vpop.f32.mrf.mxu0
      %v992 = vadd.f32 %v943, %v991
      %993 = vdwg.mxu0
      %v994 = vld [vmem:[%s2] sm:$0x1]
      %v996 = vperm.slane %v994, 0
      %v998 = vmul.f32 %v955, %v996
      %v999 = vmul.f32 %v957, %v996
      %v1000 = vmul.f32 %v960, %v996
      %v1001 = vmul.f32 %v962, %v996
      %v1002 = vmul.f32 %v965, %v996
      %v1003 = vmul.f32 %v967, %v996
      %v1004 = vmul.f32 %v970, %v996
      %v1005 = vmul.f32 %v972, %v996
      %v1006 = vmul.f32 %v975, %v996
      %v1007 = vmul.f32 %v977, %v996
      %v1008 = vmul.f32 %v980, %v996
      %v1009 = vmul.f32 %v982, %v996
      %v1010 = vmul.f32 %v985, %v996
      %v1011 = vmul.f32 %v987, %v996
      %v1012 = vmul.f32 %v990, %v996
      %v1013 = vmul.f32 %v992, %v996
      %v1014 = vld [vmem:[%s3] sm:$0x1]
      %v1016 = vperm.slane %v1014, 0
      %v1018 = vadd.f32 %v998, %v1016
      %v1019 = vadd.f32 %v999, %v1016
      %v1020 = vadd.f32 %v1000, %v1016
      %v1021 = vadd.f32 %v1001, %v1016
      %v1022 = vadd.f32 %v1002, %v1016
      %v1023 = vadd.f32 %v1003, %v1016
      %v1024 = vadd.f32 %v1004, %v1016
      %v1025 = vadd.f32 %v1005, %v1016
      %v1026 = vadd.f32 %v1006, %v1016
      %v1027 = vadd.f32 %v1007, %v1016
      %v1028 = vadd.f32 %v1008, %v1016
      %v1029 = vadd.f32 %v1009, %v1016
      %v1030 = vadd.f32 %v1010, %v1016
      %v1031 = vadd.f32 %v1011, %v1016
      %v1032 = vadd.f32 %v1012, %v1016
      %v1033 = vadd.f32 %v1013, %v1016
      %v1034 = vmax.f32 %v1018, 0.0
      %v1035 = vmax.f32 %v1019, 0.0
      %v1036 = vmax.f32 %v1020, 0.0
      %v1037 = vmax.f32 %v1021, 0.0
      %v1038 = vmax.f32 %v1022, 0.0
      %v1039 = vmax.f32 %v1023, 0.0
      %v1040 = vmax.f32 %v1024, 0.0
      %v1041 = vmax.f32 %v1025, 0.0
      %v1042 = vmax.f32 %v1026, 0.0
      %v1043 = vmax.f32 %v1027, 0.0
      %v1044 = vmax.f32 %v1028, 0.0
      %v1045 = vmax.f32 %v1029, 0.0
      %v1046 = vmax.f32 %v1030, 0.0
      %v1047 = vmax.f32 %v1031, 0.0
      %v1048 = vmax.f32 %v1032, 0.0
      %v1049 = vmax.f32 %v1033, 0.0
      %1050 = vst [vmem:[#allocation3 + $0x1] sm:$0xff] %v1034
      %1051 = vst [vmem:[#allocation3 + $0x9] sm:$0xff] %v1035
      %1052 = vst [vmem:[#allocation3 + $0x19] sm:$0xff] %v1036
      %1053 = vst [vmem:[#allocation3 + $0x21] sm:$0xff] %v1037
      %1054 = vst [vmem:[#allocation3 + $0x31] sm:$0xff] %v1038
      %1055 = vst [vmem:[#allocation3 + $0x39] sm:$0xff] %v1039
      %1056 = vst [vmem:[#allocation3 + $0x49] sm:$0xff] %v1040
      %1057 = vst [vmem:[#allocation3 + $0x51] sm:$0xff] %v1041
      %1058 = vst [vmem:[#allocation3 + $0x61] sm:$0xff] %v1042
      %1059 = vst [vmem:[#allocation3 + $0x69] sm:$0xff] %v1043
      %1060 = vst [vmem:[#allocation3 + $0x79] sm:$0xff] %v1044
      %1061 = vst [vmem:[#allocation3 + $0x81] sm:$0xff] %v1045
      %1062 = vst [vmem:[#allocation3 + $0x91] sm:$0xff] %v1046
      %1063 = vst [vmem:[#allocation3 + $0x99] sm:$0xff] %v1047
      %1064 = vst [vmem:[#allocation3 + $0xa9] sm:$0xff] %v1048
      %1065 = vst [vmem:[#allocation3 + $0xb1] sm:$0xff] %v1049
      %v1066 = vld [vmem:[#allocation3] sm:$0xff]
      %v1067 = vld [vmem:[#allocation3 + $0x8] sm:$0xff]
      %v1068 = vld [vmem:[#allocation3 + $0x18] sm:$0xff]
      %v1069 = vld [vmem:[#allocation3 + $0x20] sm:$0xff]
      %v1070 = vld [vmem:[#allocation3 + $0x30] sm:$0xff]
      %v1071 = vld [vmem:[#allocation3 + $0x38] sm:$0xff]
      %v1072 = vld [vmem:[#allocation3 + $0x48] sm:$0xff]
      %v1073 = vld [vmem:[#allocation3 + $0x50] sm:$0xff]
      %v1074 = vld [vmem:[#allocation3 + $0x60] sm:$0xff]
      %v1075 = vld [vmem:[#allocation3 + $0x68] sm:$0xff]
      %v1076 = vld [vmem:[#allocation3 + $0x78] sm:$0xff]
      %v1077 = vld [vmem:[#allocation3 + $0x80] sm:$0xff]
      %v1078 = vld [vmem:[#allocation3 + $0x90] sm:$0xff]
      %v1079 = vld [vmem:[#allocation3 + $0x98] sm:$0xff]
      %v1080 = vld [vmem:[#allocation3 + $0xa8] sm:$0xff]
      %v1081 = vld [vmem:[#allocation3 + $0xb0] sm:$0xff]
      %v1082 = vpack.c.bf16 %v1066, %v1066
      %v1083 = vpack.c.bf16 %v1067, %v1067
      %v1084 = vpack.c.bf16 %v1068, %v1068
      %v1085 = vpack.c.bf16 %v1069, %v1069
      %v1086 = vpack.c.bf16 %v1070, %v1070
      %v1087 = vpack.c.bf16 %v1071, %v1071
      %v1088 = vpack.c.bf16 %v1072, %v1072
      %v1089 = vpack.c.bf16 %v1073, %v1073
      %v1090 = vpack.c.bf16 %v1074, %v1074
      %v1091 = vpack.c.bf16 %v1075, %v1075
      %v1092 = vpack.c.bf16 %v1076, %v1076
      %v1093 = vpack.c.bf16 %v1077, %v1077
      %v1094 = vpack.c.bf16 %v1078, %v1078
      %v1095 = vpack.c.bf16 %v1079, %v1079
      %v1096 = vpack.c.bf16 %v1080, %v1080
      %v1097 = vpack.c.bf16 %v1081, %v1081
      %1098 = vst [vmem:[#allocation4] sm:$0xf] %v1082
      %1099 = vst [vmem:[#allocation4 + $0xc] sm:$0xf] %v1083
      %1100 = vst [vmem:[#allocation4 + $0x18] sm:$0xf] %v1084
      %1101 = vst [vmem:[#allocation4 + $0x24] sm:$0xf] %v1085
      %1102 = vst [vmem:[#allocation4 + $0x30] sm:$0xf] %v1086
      %1103 = vst [vmem:[#allocation4 + $0x3c] sm:$0xf] %v1087
      %1104 = vst [vmem:[#allocation4 + $0x48] sm:$0xf] %v1088
      %1105 = vst [vmem:[#allocation4 + $0x54] sm:$0xf] %v1089
      %1106 = vst [vmem:[#allocation4 + $0x60] sm:$0xf] %v1090
      %1107 = vst [vmem:[#allocation4 + $0x6c] sm:$0xf] %v1091
      %1108 = vst [vmem:[#allocation4 + $0x78] sm:$0xf] %v1092
      %1109 = vst [vmem:[#allocation4 + $0x84] sm:$0xf] %v1093
      %1110 = vst [vmem:[#allocation4 + $0x90] sm:$0xf] %v1094
      %1111 = vst [vmem:[#allocation4 + $0x9c] sm:$0xf] %v1095
      %1112 = vst [vmem:[#allocation4 + $0xa8] sm:$0xf] %v1096
      %1113 = vst [vmem:[#allocation4 + $0xb4] sm:$0xf] %v1097
      %v1114 = vld [vmem:[#allocation3 + $0x1] sm:$0xff]
      %v1115 = vld [vmem:[#allocation3 + $0x9] sm:$0xff]
      %v1116 = vld [vmem:[#allocation3 + $0x19] sm:$0xff]
      %v1117 = vld [vmem:[#allocation3 + $0x21] sm:$0xff]
      %v1118 = vld [vmem:[#allocation3 + $0x31] sm:$0xff]
      %v1119 = vld [vmem:[#allocation3 + $0x39] sm:$0xff]
      %v1120 = vld [vmem:[#allocation3 + $0x49] sm:$0xff]
      %v1121 = vld [vmem:[#allocation3 + $0x51] sm:$0xff]
      %v1122 = vld [vmem:[#allocation3 + $0x61] sm:$0xff]
      %v1123 = vld [vmem:[#allocation3 + $0x69] sm:$0xff]
      %v1124 = vld [vmem:[#allocation3 + $0x79] sm:$0xff]
      %v1125 = vld [vmem:[#allocation3 + $0x81] sm:$0xff]
      %v1126 = vld [vmem:[#allocation3 + $0x91] sm:$0xff]
      %v1127 = vld [vmem:[#allocation3 + $0x99] sm:$0xff]
      %v1128 = vld [vmem:[#allocation3 + $0xa9] sm:$0xff]
      %v1129 = vld [vmem:[#allocation3 + $0xb1] sm:$0xff]
      %v1130 = vpack.c.bf16 %v1114, %v1114
      %v1131 = vpack.c.bf16 %v1115, %v1115
      %v1132 = vpack.c.bf16 %v1116, %v1116
      %v1133 = vpack.c.bf16 %v1117, %v1117
      %v1134 = vpack.c.bf16 %v1118, %v1118
      %v1135 = vpack.c.bf16 %v1119, %v1119
      %v1136 = vpack.c.bf16 %v1120, %v1120
      %v1137 = vpack.c.bf16 %v1121, %v1121
      %v1138 = vpack.c.bf16 %v1122, %v1122
      %v1139 = vpack.c.bf16 %v1123, %v1123
      %v1140 = vpack.c.bf16 %v1124, %v1124
      %v1141 = vpack.c.bf16 %v1125, %v1125
      %v1142 = vpack.c.bf16 %v1126, %v1126
      %v1143 = vpack.c.bf16 %v1127, %v1127
      %v1144 = vpack.c.bf16 %v1128, %v1128
      %v1145 = vpack.c.bf16 %v1129, %v1129
      %1146 = vst [vmem:[#allocation4 + $0x4] sm:$0xf] %v1130
      %1147 = vst [vmem:[#allocation4 + $0x10] sm:$0xf] %v1131
      %1148 = vst [vmem:[#allocation4 + $0x1c] sm:$0xf] %v1132
      %1149 = vst [vmem:[#allocation4 + $0x28] sm:$0xf] %v1133
      %1150 = vst [vmem:[#allocation4 + $0x34] sm:$0xf] %v1134
      %1151 = vst [vmem:[#allocation4 + $0x40] sm:$0xf] %v1135
      %1152 = vst [vmem:[#allocation4 + $0x4c] sm:$0xf] %v1136
      %1153 = vst [vmem:[#allocation4 + $0x58] sm:$0xf] %v1137
      %1154 = vst [vmem:[#allocation4 + $0x64] sm:$0xf] %v1138
      %1155 = vst [vmem:[#allocation4 + $0x70] sm:$0xf] %v1139
      %1156 = vst [vmem:[#allocation4 + $0x7c] sm:$0xf] %v1140
      %1157 = vst [vmem:[#allocation4 + $0x88] sm:$0xf] %v1141
      %1158 = vst [vmem:[#allocation4 + $0x94] sm:$0xf] %v1142
      %1159 = vst [vmem:[#allocation4 + $0xa0] sm:$0xf] %v1143
      %1160 = vst [vmem:[#allocation4 + $0xac] sm:$0xf] %v1144
      %1161 = vst [vmem:[#allocation4 + $0xb8] sm:$0xf] %v1145
      %v1162 = vld [vmem:[#allocation3 + $0x2] sm:$0xff]
      %v1163 = vld [vmem:[#allocation3 + $0xa] sm:$0xff]
      %v1164 = vld [vmem:[#allocation3 + $0x1a] sm:$0xff]
      %v1165 = vld [vmem:[#allocation3 + $0x22] sm:$0xff]
      %v1166 = vld [vmem:[#allocation3 + $0x32] sm:$0xff]
      %v1167 = vld [vmem:[#allocation3 + $0x3a] sm:$0xff]
      %v1168 = vld [vmem:[#allocation3 + $0x4a] sm:$0xff]
      %v1169 = vld [vmem:[#allocation3 + $0x52] sm:$0xff]
      %v1170 = vld [vmem:[#allocation3 + $0x62] sm:$0xff]
      %v1171 = vld [vmem:[#allocation3 + $0x6a] sm:$0xff]
      %v1172 = vld [vmem:[#allocation3 + $0x7a] sm:$0xff]
      %v1173 = vld [vmem:[#allocation3 + $0x82] sm:$0xff]
      %v1174 = vld [vmem:[#allocation3 + $0x92] sm:$0xff]
      %v1175 = vld [vmem:[#allocation3 + $0x9a] sm:$0xff]
      %v1176 = vld [vmem:[#allocation3 + $0xaa] sm:$0xff]
      %v1177 = vld [vmem:[#allocation3 + $0xb2] sm:$0xff]
      %v1178 = vpack.c.bf16 %v1162, %v1162
      %v1179 = vpack.c.bf16 %v1163, %v1163
      %v1180 = vpack.c.bf16 %v1164, %v1164
      %v1181 = vpack.c.bf16 %v1165, %v1165
      %v1182 = vpack.c.bf16 %v1166, %v1166
      %v1183 = vpack.c.bf16 %v1167, %v1167
      %v1184 = vpack.c.bf16 %v1168, %v1168
      %v1185 = vpack.c.bf16 %v1169, %v1169
      %v1186 = vpack.c.bf16 %v1170, %v1170
      %v1187 = vpack.c.bf16 %v1171, %v1171
      %v1188 = vpack.c.bf16 %v1172, %v1172
      %v1189 = vpack.c.bf16 %v1173, %v1173
      %v1190 = vpack.c.bf16 %v1174, %v1174
      %v1191 = vpack.c.bf16 %v1175, %v1175
      %v1192 = vpack.c.bf16 %v1176, %v1176
      %v1193 = vpack.c.bf16 %v1177, %v1177
      %1194 = vst [vmem:[#allocation4 + $0x8] sm:$0xf] %v1178
      %1195 = vst [vmem:[#allocation4 + $0x14] sm:$0xf] %v1179
      %1196 = vst [vmem:[#allocation4 + $0x20] sm:$0xf] %v1180
      %1197 = vst [vmem:[#allocation4 + $0x2c] sm:$0xf] %v1181
      %1198 = vst [vmem:[#allocation4 + $0x38] sm:$0xf] %v1182
      %1199 = vst [vmem:[#allocation4 + $0x44] sm:$0xf] %v1183
      %1200 = vst [vmem:[#allocation4 + $0x50] sm:$0xf] %v1184
      %1201 = vst [vmem:[#allocation4 + $0x5c] sm:$0xf] %v1185
      %1202 = vst [vmem:[#allocation4 + $0x68] sm:$0xf] %v1186
      %1203 = vst [vmem:[#allocation4 + $0x74] sm:$0xf] %v1187
      %1204 = vst [vmem:[#allocation4 + $0x80] sm:$0xf] %v1188
      %1205 = vst [vmem:[#allocation4 + $0x8c] sm:$0xf] %v1189
      %1206 = vst [vmem:[#allocation4 + $0x98] sm:$0xf] %v1190
      %1207 = vst [vmem:[#allocation4 + $0xa4] sm:$0xf] %v1191
      %1208 = vst [vmem:[#allocation4 + $0xb0] sm:$0xf] %v1192
      %1209 = vst [vmem:[#allocation4 + $0xbc] sm:$0xf] %v1193
      %v1210 = vld [vmem:[#allocation4] sm:$0xff]
      %v1211 = vld [vmem:[#allocation4 + $0x8] sm:$0xf]
      %v1212 = vld [vmem:[#allocation4 + $0xc] sm:$0xff]
      %v1213 = vld [vmem:[#allocation4 + $0x14] sm:$0xf]
      %v1214 = vld [vmem:[#allocation4 + $0x18] sm:$0xff]
      %v1215 = vld [vmem:[#allocation4 + $0x20] sm:$0xf]
      %v1216 = vld [vmem:[#allocation4 + $0x24] sm:$0xff]
      %v1217 = vld [vmem:[#allocation4 + $0x2c] sm:$0xf]
      %v1218 = vld [vmem:[#allocation4 + $0x30] sm:$0xff]
      %v1219 = vld [vmem:[#allocation4 + $0x38] sm:$0xf]
      %v1220 = vld [vmem:[#allocation4 + $0x3c] sm:$0xff]
      %v1221 = vld [vmem:[#allocation4 + $0x44] sm:$0xf]
      %v1222 = vld [vmem:[#allocation4 + $0x48] sm:$0xff]
      %v1223 = vld [vmem:[#allocation4 + $0x50] sm:$0xf]
      %v1224 = vld [vmem:[#allocation4 + $0x54] sm:$0xff]
      %v1225 = vld [vmem:[#allocation4 + $0x5c] sm:$0xf]
      %v1226 = vld [vmem:[#allocation4 + $0x60] sm:$0xff]
      %v1227 = vld [vmem:[#allocation4 + $0x68] sm:$0xf]
      %v1228 = vld [vmem:[#allocation4 + $0x6c] sm:$0xff]
      %v1229 = vld [vmem:[#allocation4 + $0x74] sm:$0xf]
      %v1230 = vld [vmem:[#allocation4 + $0x78] sm:$0xff]
      %v1231 = vld [vmem:[#allocation4 + $0x80] sm:$0xf]
      %v1232 = vld [vmem:[#allocation4 + $0x84] sm:$0xff]
      %v1233 = vld [vmem:[#allocation4 + $0x8c] sm:$0xf]
      %v1234 = vld [vmem:[#allocation4 + $0x90] sm:$0xff]
      %v1235 = vld [vmem:[#allocation4 + $0x98] sm:$0xf]
      %v1236 = vld [vmem:[#allocation4 + $0x9c] sm:$0xff]
      %v1237 = vld [vmem:[#allocation4 + $0xa4] sm:$0xf]
      %v1238 = vld [vmem:[#allocation4 + $0xa8] sm:$0xff]
      %v1239 = vld [vmem:[#allocation4 + $0xb0] sm:$0xf]
      %v1240 = vld [vmem:[#allocation4 + $0xb4] sm:$0xff]
      %v1241 = vld [vmem:[#allocation4 + $0xbc] sm:$0xf]
      %v1242 = vld [vmem:[%s4] sm:$0xf]
      %v1243 = vld [vmem:[%s4 + $0x4] sm:$0xf]
      %v1244 = vld [vmem:[%s4 + $0x8] sm:$0xf]
      %v1245 = vld [vmem:[%s4 + $0xc] sm:$0xf]
      %v1246 = vld [vmem:[%s4 + $0x10] sm:$0xf]
      %v1247 = vld [vmem:[%s4 + $0x14] sm:$0xf]
      %v1248 = vld [vmem:[%s4 + $0x18] sm:$0xf]
      %v1249 = vld [vmem:[%s4 + $0x1c] sm:$0xf]
      %v1250 = vld [vmem:[%s4 + $0x20] sm:$0xf]
      %v1251 = vld [vmem:[%s4 + $0x24] sm:$0xf]
      %v1252 = vld [vmem:[%s4 + $0x28] sm:$0xf]
      %v1253 = vld [vmem:[%s4 + $0x2c] sm:$0xf]
      %v1254 = vld [vmem:[%s4 + $0x30] sm:$0xf]
      %v1255 = vld [vmem:[%s4 + $0x34] sm:$0xf]
      %v1256 = vld [vmem:[%s4 + $0x38] sm:$0xf]
      %v1257 = vld [vmem:[%s4 + $0x3c] sm:$0xf]
      %v1258 = vld [vmem:[%s4 + $0x40] sm:$0xf]
      %v1259 = vld [vmem:[%s4 + $0x44] sm:$0xf]
      %v1260 = vld [vmem:[%s4 + $0x48] sm:$0xf]
      %v1261 = vld [vmem:[%s4 + $0x4c] sm:$0xf]
      %v1262 = vld [vmem:[%s4 + $0x50] sm:$0xf]
      %v1263 = vld [vmem:[%s4 + $0x54] sm:$0xf]
      %v1264 = vld [vmem:[%s4 + $0x58] sm:$0xf]
      %v1265 = vld [vmem:[%s4 + $0x5c] sm:$0xf]
      %v1266 = vld [vmem:[%s4 + $0x60] sm:$0xf]
      %v1267 = vld [vmem:[%s4 + $0x64] sm:$0xf]
      %v1268 = vld [vmem:[%s4 + $0x68] sm:$0xf]
      %v1269 = vld [vmem:[%s4 + $0x6c] sm:$0xf]
      %v1270 = vld [vmem:[%s4 + $0x70] sm:$0xf]
      %v1271 = vld [vmem:[%s4 + $0x74] sm:$0xf]
      %v1272 = vld [vmem:[%s4 + $0x78] sm:$0xf]
      %v1273 = vld [vmem:[%s4 + $0x7c] sm:$0xf]
      %v1274 = vld [vmem:[%s4 + $0x80] sm:$0xf]
      %v1275 = vld [vmem:[%s4 + $0x84] sm:$0xf]
      %v1276 = vld [vmem:[%s4 + $0x88] sm:$0xf]
      %v1277 = vld [vmem:[%s4 + $0x8c] sm:$0xf]
      %v1278 = vld [vmem:[%s4 + $0x90] sm:$0xf]
      %v1279 = vld [vmem:[%s4 + $0x94] sm:$0xf]
      %v1280 = vld [vmem:[%s4 + $0x98] sm:$0xf]
      %v1281 = vld [vmem:[%s4 + $0x9c] sm:$0xf]
      %v1282 = vld [vmem:[%s4 + $0xa0] sm:$0xf]
      %v1283 = vld [vmem:[%s4 + $0xa4] sm:$0xf]
      %v1284 = vld [vmem:[%s4 + $0xa8] sm:$0xf]
      %v1285 = vld [vmem:[%s4 + $0xac] sm:$0xf]
      %v1286 = vld [vmem:[%s4 + $0xb0] sm:$0xf]
      %v1287 = vld [vmem:[%s4 + $0xb4] sm:$0xf]
      %v1288 = vld [vmem:[%s4 + $0xb8] sm:$0xf]
      %v1289 = vld [vmem:[%s4 + $0xbc] sm:$0xf]
      %v1322 = vunpack.c.l.b16 %v1210
      %v1323 = vunpack.c.h.b16 %v1210
      %v1324 = vunpack.c.l.b16 %v1211
      %v1325 = vunpack.c.l.b16 %v1212
      %v1326 = vunpack.c.h.b16 %v1212
      %v1327 = vunpack.c.l.b16 %v1213
      %v1328 = vunpack.c.l.b16 %v1214
      %v1329 = vunpack.c.h.b16 %v1214
      %v1330 = vunpack.c.l.b16 %v1215
      %v1331 = vunpack.c.l.b16 %v1216
      %v1332 = vunpack.c.h.b16 %v1216
      %v1333 = vunpack.c.l.b16 %v1217
      %v1334 = vunpack.c.l.b16 %v1218
      %v1335 = vunpack.c.h.b16 %v1218
      %v1336 = vunpack.c.l.b16 %v1219
      %v1337 = vunpack.c.l.b16 %v1220
      %v1338 = vunpack.c.h.b16 %v1220
      %v1339 = vunpack.c.l.b16 %v1221
      %v1340 = vunpack.c.l.b16 %v1222
      %v1341 = vunpack.c.h.b16 %v1222
      %v1342 = vunpack.c.l.b16 %v1223
      %v1343 = vunpack.c.l.b16 %v1224
      %v1344 = vunpack.c.h.b16 %v1224
      %v1345 = vunpack.c.l.b16 %v1225
      %v1346 = vunpack.c.l.b16 %v1226
      %v1347 = vunpack.c.h.b16 %v1226
      %v1348 = vunpack.c.l.b16 %v1227
      %v1349 = vunpack.c.l.b16 %v1228
      %v1350 = vunpack.c.h.b16 %v1228
      %v1351 = vunpack.c.l.b16 %v1229
      %v1352 = vunpack.c.l.b16 %v1230
      %v1353 = vunpack.c.h.b16 %v1230
      %v1354 = vunpack.c.l.b16 %v1231
      %v1355 = vunpack.c.l.b16 %v1232
      %v1356 = vunpack.c.h.b16 %v1232
      %v1357 = vunpack.c.l.b16 %v1233
      %v1358 = vunpack.c.l.b16 %v1234
      %v1359 = vunpack.c.h.b16 %v1234
      %v1360 = vunpack.c.l.b16 %v1235
      %v1361 = vunpack.c.l.b16 %v1236
      %v1362 = vunpack.c.h.b16 %v1236
      %v1363 = vunpack.c.l.b16 %v1237
      %v1364 = vunpack.c.l.b16 %v1238
      %v1365 = vunpack.c.h.b16 %v1238
      %v1366 = vunpack.c.l.b16 %v1239
      %v1367 = vunpack.c.l.b16 %v1240
      %v1368 = vunpack.c.h.b16 %v1240
      %v1369 = vunpack.c.l.b16 %v1241
      %v1370 = vpack.c.b16 %v1325, %v1322
      %v1371 = vpack.c.b16 %v1326, %v1323
      %v1372 = vpack.c.b16 %v1327, %v1324
      %v1373 = vpack.c.b16 %v1331, %v1328
      %v1374 = vpack.c.b16 %v1332, %v1329
      %v1375 = vpack.c.b16 %v1333, %v1330
      %v1376 = vpack.c.b16 %v1337, %v1334
      %v1377 = vpack.c.b16 %v1338, %v1335
      %v1378 = vpack.c.b16 %v1339, %v1336
      %v1379 = vpack.c.b16 %v1343, %v1340
      %v1380 = vpack.c.b16 %v1344, %v1341
      %v1381 = vpack.c.b16 %v1345, %v1342
      %v1382 = vpack.c.b16 %v1349, %v1346
      %v1383 = vpack.c.b16 %v1350, %v1347
      %v1384 = vpack.c.b16 %v1351, %v1348
      %v1385 = vpack.c.b16 %v1355, %v1352
      %v1386 = vpack.c.b16 %v1356, %v1353
      %v1387 = vpack.c.b16 %v1357, %v1354
      %v1388 = vpack.c.b16 %v1361, %v1358
      %v1389 = vpack.c.b16 %v1362, %v1359
      %v1390 = vpack.c.b16 %v1363, %v1360
      %v1391 = vpack.c.b16 %v1367, %v1364
      %v1392 = vpack.c.b16 %v1368, %v1365
      %v1393 = vpack.c.b16 %v1369, %v1366
      %v1466 = vunpack.c.l.b16 %v1242
      %v1467 = vunpack.c.l.b16 %v1243
      %v1468 = vunpack.c.l.b16 %v1244
      %v1469 = vunpack.c.l.b16 %v1245
      %v1470 = vunpack.c.l.b16 %v1246
      %v1471 = vunpack.c.l.b16 %v1247
      %v1472 = vunpack.c.l.b16 %v1248
      %v1473 = vunpack.c.l.b16 %v1249
      %v1474 = vunpack.c.l.b16 %v1250
      %v1475 = vunpack.c.l.b16 %v1251
      %v1476 = vunpack.c.l.b16 %v1252
      %v1477 = vunpack.c.l.b16 %v1253
      %v1478 = vunpack.c.l.b16 %v1254
      %v1479 = vunpack.c.l.b16 %v1255
      %v1480 = vunpack.c.l.b16 %v1256
      %v1481 = vunpack.c.l.b16 %v1257
      %v1482 = vunpack.c.l.b16 %v1258
      %v1483 = vunpack.c.l.b16 %v1259
      %v1484 = vunpack.c.l.b16 %v1260
      %v1485 = vunpack.c.l.b16 %v1261
      %v1486 = vunpack.c.l.b16 %v1262
      %v1487 = vunpack.c.l.b16 %v1263
      %v1488 = vunpack.c.l.b16 %v1264
      %v1489 = vunpack.c.l.b16 %v1265
      %v1490 = vunpack.c.l.b16 %v1266
      %v1491 = vunpack.c.l.b16 %v1267
      %v1492 = vunpack.c.l.b16 %v1268
      %v1493 = vunpack.c.l.b16 %v1269
      %v1494 = vunpack.c.l.b16 %v1270
      %v1495 = vunpack.c.l.b16 %v1271
      %v1496 = vunpack.c.l.b16 %v1272
      %v1497 = vunpack.c.l.b16 %v1273
      %v1498 = vunpack.c.l.b16 %v1274
      %v1499 = vunpack.c.l.b16 %v1275
      %v1500 = vunpack.c.l.b16 %v1276
      %v1501 = vunpack.c.l.b16 %v1277
      %v1502 = vunpack.c.l.b16 %v1278
      %v1503 = vunpack.c.l.b16 %v1279
      %v1504 = vunpack.c.l.b16 %v1280
      %v1505 = vunpack.c.l.b16 %v1281
      %v1506 = vunpack.c.l.b16 %v1282
      %v1507 = vunpack.c.l.b16 %v1283
      %v1508 = vunpack.c.l.b16 %v1284
      %v1509 = vunpack.c.l.b16 %v1285
      %v1510 = vunpack.c.l.b16 %v1286
      %v1511 = vunpack.c.l.b16 %v1287
      %v1512 = vunpack.c.l.b16 %v1288
      %v1513 = vunpack.c.l.b16 %v1289
      %v1514 = vpack.c.b16 %v1467, %v1466
      %v1515 = vpack.c.b16 %v1469, %v1468
      %v1516 = vpack.c.b16 %v1471, %v1470
      %v1517 = vpack.c.b16 %v1473, %v1472
      %v1518 = vpack.c.b16 %v1475, %v1474
      %v1519 = vpack.c.b16 %v1477, %v1476
      %v1520 = vpack.c.b16 %v1479, %v1478
      %v1521 = vpack.c.b16 %v1481, %v1480
      %v1522 = vpack.c.b16 %v1483, %v1482
      %v1523 = vpack.c.b16 %v1485, %v1484
      %v1524 = vpack.c.b16 %v1487, %v1486
      %v1525 = vpack.c.b16 %v1489, %v1488
      %v1526 = vpack.c.b16 %v1491, %v1490
      %v1527 = vpack.c.b16 %v1493, %v1492
      %v1528 = vpack.c.b16 %v1495, %v1494
      %v1529 = vpack.c.b16 %v1497, %v1496
      %v1530 = vpack.c.b16 %v1499, %v1498
      %v1531 = vpack.c.b16 %v1501, %v1500
      %v1532 = vpack.c.b16 %v1503, %v1502
      %v1533 = vpack.c.b16 %v1505, %v1504
      %v1534 = vpack.c.b16 %v1507, %v1506
      %v1535 = vpack.c.b16 %v1509, %v1508
      %v1536 = vpack.c.b16 %v1511, %v1510
      %v1537 = vpack.c.b16 %v1513, %v1512
      %1562 = vmatpush.bf16.msra.mxu0 %v1521
      %1563 = vmatpush.bf16.msra.mxu0 %v1520
      %1564 = vmatpush.bf16.msra.mxu0 %v1519
      %1565 = vmatpush.bf16.msra.mxu0 %v1518
      %1566 = vmatpush.bf16.msra.mxu0 %v1517
      %1567 = vmatpush.bf16.msra.mxu0 %v1516
      %1568 = vmatpush.bf16.msra.mxu0 %v1515
      %1569 = vmatpush.bf16.msra.mxu0 %v1514
      %1570 = vmatmul.bf16.gmra.mxu0 %v1370
      %v1571 = vpop.f32.mrf.mxu0
      %v1572 = vadd.f32 0.0, %v1571
      %v1573 = vpop.f32.mrf.mxu0
      %v1574 = vadd.f32 0.0, %v1573
      %1575 = vmatmul.bf16.gmra.mxu0 %v1373
      %v1576 = vpop.f32.mrf.mxu0
      %v1577 = vadd.f32 0.0, %v1576
      %v1578 = vpop.f32.mrf.mxu0
      %v1579 = vadd.f32 0.0, %v1578
      %1580 = vmatmul.bf16.gmra.mxu0 %v1376
      %v1581 = vpop.f32.mrf.mxu0
      %v1582 = vadd.f32 0.0, %v1581
      %v1583 = vpop.f32.mrf.mxu0
      %v1584 = vadd.f32 0.0, %v1583
      %1585 = vmatmul.bf16.gmra.mxu0 %v1379
      %v1586 = vpop.f32.mrf.mxu0
      %v1587 = vadd.f32 0.0, %v1586
      %v1588 = vpop.f32.mrf.mxu0
      %v1589 = vadd.f32 0.0, %v1588
      %1590 = vmatmul.bf16.gmra.mxu0 %v1382
      %v1591 = vpop.f32.mrf.mxu0
      %v1592 = vadd.f32 0.0, %v1591
      %v1593 = vpop.f32.mrf.mxu0
      %v1594 = vadd.f32 0.0, %v1593
      %1595 = vmatmul.bf16.gmra.mxu0 %v1385
      %v1596 = vpop.f32.mrf.mxu0
      %v1597 = vadd.f32 0.0, %v1596
      %v1598 = vpop.f32.mrf.mxu0
      %v1599 = vadd.f32 0.0, %v1598
      %1600 = vmatmul.bf16.gmra.mxu0 %v1388
      %v1601 = vpop.f32.mrf.mxu0
      %v1602 = vadd.f32 0.0, %v1601
      %v1603 = vpop.f32.mrf.mxu0
      %v1604 = vadd.f32 0.0, %v1603
      %1605 = vmatmul.bf16.gmra.mxu0 %v1391
      %v1606 = vpop.f32.mrf.mxu0
      %v1607 = vadd.f32 0.0, %v1606
      %v1608 = vpop.f32.mrf.mxu0
      %v1609 = vadd.f32 0.0, %v1608
      %1610 = vdwg.mxu0
      %1611 = vmatpush.bf16.msra.mxu0 %v1529
      %1612 = vmatpush.bf16.msra.mxu0 %v1528
      %1613 = vmatpush.bf16.msra.mxu0 %v1527
      %1614 = vmatpush.bf16.msra.mxu0 %v1526
      %1615 = vmatpush.bf16.msra.mxu0 %v1525
      %1616 = vmatpush.bf16.msra.mxu0 %v1524
      %1617 = vmatpush.bf16.msra.mxu0 %v1523
      %1618 = vmatpush.bf16.msra.mxu0 %v1522
      %1619 = vmatmul.bf16.gmra.mxu0 %v1371
      %v1620 = vpop.f32.mrf.mxu0
      %v1621 = vadd.f32 %v1572, %v1620
      %v1622 = vpop.f32.mrf.mxu0
      %v1623 = vadd.f32 %v1574, %v1622
      %1624 = vmatmul.bf16.gmra.mxu0 %v1374
      %v1625 = vpop.f32.mrf.mxu0
      %v1626 = vadd.f32 %v1577, %v1625
      %v1627 = vpop.f32.mrf.mxu0
      %v1628 = vadd.f32 %v1579, %v1627
      %1629 = vmatmul.bf16.gmra.mxu0 %v1377
      %v1630 = vpop.f32.mrf.mxu0
      %v1631 = vadd.f32 %v1582, %v1630
      %v1632 = vpop.f32.mrf.mxu0
      %v1633 = vadd.f32 %v1584, %v1632
      %1634 = vmatmul.bf16.gmra.mxu0 %v1380
      %v1635 = vpop.f32.mrf.mxu0
      %v1636 = vadd.f32 %v1587, %v1635
      %v1637 = vpop.f32.mrf.mxu0
      %v1638 = vadd.f32 %v1589, %v1637
      %1639 = vmatmul.bf16.gmra.mxu0 %v1383
      %v1640 = vpop.f32.mrf.mxu0
      %v1641 = vadd.f32 %v1592, %v1640
      %v1642 = vpop.f32.mrf.mxu0
      %v1643 = vadd.f32 %v1594, %v1642
      %1644 = vmatmul.bf16.gmra.mxu0 %v1386
      %v1645 = vpop.f32.mrf.mxu0
      %v1646 = vadd.f32 %v1597, %v1645
      %v1647 = vpop.f32.mrf.mxu0
      %v1648 = vadd.f32 %v1599, %v1647
      %1649 = vmatmul.bf16.gmra.mxu0 %v1389
      %v1650 = vpop.f32.mrf.mxu0
      %v1651 = vadd.f32 %v1602, %v1650
      %v1652 = vpop.f32.mrf.mxu0
      %v1653 = vadd.f32 %v1604, %v1652
      %1654 = vmatmul.bf16.gmra.mxu0 %v1392
      %v1655 = vpop.f32.mrf.mxu0
      %v1656 = vadd.f32 %v1607, %v1655
      %v1657 = vpop.f32.mrf.mxu0
      %v1658 = vadd.f32 %v1609, %v1657
      %1659 = vdwg.mxu0
      %1660 = vmatpush.bf16.msra.mxu0 %v1537
      %1661 = vmatpush.bf16.msra.mxu0 %v1536
      %1662 = vmatpush.bf16.msra.mxu0 %v1535
      %1663 = vmatpush.bf16.msra.mxu0 %v1534
      %1664 = vmatpush.bf16.msra.mxu0 %v1533
      %1665 = vmatpush.bf16.msra.mxu0 %v1532
      %1666 = vmatpush.bf16.msra.mxu0 %v1531
      %1667 = vmatpush.bf16.msra.mxu0 %v1530
      %1668 = vmatmul.bf16.gmra.mxu0 %v1372
      %v1669 = vpop.f32.mrf.mxu0
      %v1670 = vadd.f32 %v1621, %v1669
      %v1671 = vpop.f32.mrf.mxu0
      %v1672 = vadd.f32 %v1623, %v1671
      %1673 = vmatmul.bf16.gmra.mxu0 %v1375
      %v1674 = vpop.f32.mrf.mxu0
      %v1675 = vadd.f32 %v1626, %v1674
      %v1676 = vpop.f32.mrf.mxu0
      %v1677 = vadd.f32 %v1628, %v1676
      %1678 = vmatmul.bf16.gmra.mxu0 %v1378
      %v1679 = vpop.f32.mrf.mxu0
      %v1680 = vadd.f32 %v1631, %v1679
      %v1681 = vpop.f32.mrf.mxu0
      %v1682 = vadd.f32 %v1633, %v1681
      %1683 = vmatmul.bf16.gmra.mxu0 %v1381
      %v1684 = vpop.f32.mrf.mxu0
      %v1685 = vadd.f32 %v1636, %v1684
      %v1686 = vpop.f32.mrf.mxu0
      %v1687 = vadd.f32 %v1638, %v1686
      %1688 = vmatmul.bf16.gmra.mxu0 %v1384
      %v1689 = vpop.f32.mrf.mxu0
      %v1690 = vadd.f32 %v1641, %v1689
      %v1691 = vpop.f32.mrf.mxu0
      %v1692 = vadd.f32 %v1643, %v1691
      %1693 = vmatmul.bf16.gmra.mxu0 %v1387
      %v1694 = vpop.f32.mrf.mxu0
      %v1695 = vadd.f32 %v1646, %v1694
      %v1696 = vpop.f32.mrf.mxu0
      %v1697 = vadd.f32 %v1648, %v1696
      %1698 = vmatmul.bf16.gmra.mxu0 %v1390
      %v1699 = vpop.f32.mrf.mxu0
      %v1700 = vadd.f32 %v1651, %v1699
      %v1701 = vpop.f32.mrf.mxu0
      %v1702 = vadd.f32 %v1653, %v1701
      %1703 = vmatmul.bf16.gmra.mxu0 %v1393
      %v1704 = vpop.f32.mrf.mxu0
      %v1705 = vadd.f32 %v1656, %v1704
      %v1706 = vpop.f32.mrf.mxu0
      %v1707 = vadd.f32 %v1658, %v1706
      %1708 = vdwg.mxu0
      %v1709 = vld [vmem:[%s5] sm:$0x1]
      %v1711 = vperm.slane %v1709, 0
      %v1713 = vmul.f32 %v1670, %v1711
      %v1714 = vmul.f32 %v1672, %v1711
      %v1715 = vmul.f32 %v1675, %v1711
      %v1716 = vmul.f32 %v1677, %v1711
      %v1717 = vmul.f32 %v1680, %v1711
      %v1718 = vmul.f32 %v1682, %v1711
      %v1719 = vmul.f32 %v1685, %v1711
      %v1720 = vmul.f32 %v1687, %v1711
      %v1721 = vmul.f32 %v1690, %v1711
      %v1722 = vmul.f32 %v1692, %v1711
      %v1723 = vmul.f32 %v1695, %v1711
      %v1724 = vmul.f32 %v1697, %v1711
      %v1725 = vmul.f32 %v1700, %v1711
      %v1726 = vmul.f32 %v1702, %v1711
      %v1727 = vmul.f32 %v1705, %v1711
      %v1728 = vmul.f32 %v1707, %v1711
      %v1729 = vld [vmem:[%s6] sm:$0x1]
      %v1731 = vperm.slane %v1729, 0
      %v1733 = vadd.f32 %v1713, %v1731
      %v1734 = vadd.f32 %v1714, %v1731
      %v1735 = vadd.f32 %v1715, %v1731
      %v1736 = vadd.f32 %v1716, %v1731
      %v1737 = vadd.f32 %v1717, %v1731
      %v1738 = vadd.f32 %v1718, %v1731
      %v1739 = vadd.f32 %v1719, %v1731
      %v1740 = vadd.f32 %v1720, %v1731
      %v1741 = vadd.f32 %v1721, %v1731
      %v1742 = vadd.f32 %v1722, %v1731
      %v1743 = vadd.f32 %v1723, %v1731
      %v1744 = vadd.f32 %v1724, %v1731
      %v1745 = vadd.f32 %v1725, %v1731
      %v1746 = vadd.f32 %v1726, %v1731
      %v1747 = vadd.f32 %v1727, %v1731
      %v1748 = vadd.f32 %v1728, %v1731
      %v1749 = vld [vmem:[%s278] sm:$0xff]
      %v1750 = vld [vmem:[%s278 + $0x8] sm:$0xff]
      %v1751 = vld [vmem:[%s278 + $0x10] sm:$0xff]
      %v1752 = vld [vmem:[%s278 + $0x18] sm:$0xff]
      %v1753 = vld [vmem:[%s278 + $0x20] sm:$0xff]
      %v1754 = vld [vmem:[%s278 + $0x28] sm:$0xff]
      %v1755 = vld [vmem:[%s278 + $0x30] sm:$0xff]
      %v1756 = vld [vmem:[%s278 + $0x38] sm:$0xff]
      %v1757 = vld [vmem:[%s278 + $0x40] sm:$0xff]
      %v1758 = vld [vmem:[%s278 + $0x48] sm:$0xff]
      %v1759 = vld [vmem:[%s278 + $0x50] sm:$0xff]
      %v1760 = vld [vmem:[%s278 + $0x58] sm:$0xff]
      %v1761 = vld [vmem:[%s278 + $0x60] sm:$0xff]
      %v1762 = vld [vmem:[%s278 + $0x68] sm:$0xff]
      %v1763 = vld [vmem:[%s278 + $0x70] sm:$0xff]
      %v1764 = vld [vmem:[%s278 + $0x78] sm:$0xff]
      %v1765 = vadd.f32 %v1733, %v1749
      %v1766 = vadd.f32 %v1734, %v1750
      %v1767 = vadd.f32 %v1735, %v1751
      %v1768 = vadd.f32 %v1736, %v1752
      %v1769 = vadd.f32 %v1737, %v1753
      %v1770 = vadd.f32 %v1738, %v1754
      %v1771 = vadd.f32 %v1739, %v1755
      %v1772 = vadd.f32 %v1740, %v1756
      %v1773 = vadd.f32 %v1741, %v1757
      %v1774 = vadd.f32 %v1742, %v1758
      %v1775 = vadd.f32 %v1743, %v1759
      %v1776 = vadd.f32 %v1744, %v1760
      %v1777 = vadd.f32 %v1745, %v1761
      %v1778 = vadd.f32 %v1746, %v1762
      %v1779 = vadd.f32 %v1747, %v1763
      %v1780 = vadd.f32 %v1748, %v1764
      %v1781 = vmax.f32 %v1765, 0.0
      %v1782 = vmax.f32 %v1766, 0.0
      %v1783 = vmax.f32 %v1767, 0.0
      %v1784 = vmax.f32 %v1768, 0.0
      %v1785 = vmax.f32 %v1769, 0.0
      %v1786 = vmax.f32 %v1770, 0.0
      %v1787 = vmax.f32 %v1771, 0.0
      %v1788 = vmax.f32 %v1772, 0.0
      %v1789 = vmax.f32 %v1773, 0.0
      %v1790 = vmax.f32 %v1774, 0.0
      %v1791 = vmax.f32 %v1775, 0.0
      %v1792 = vmax.f32 %v1776, 0.0
      %v1793 = vmax.f32 %v1777, 0.0
      %v1794 = vmax.f32 %v1778, 0.0
      %v1795 = vmax.f32 %v1779, 0.0
      %v1796 = vmax.f32 %v1780, 0.0
      %1797 = vst [vmem:[%s285] sm:$0xff] %v1781
      %1798 = vst [vmem:[%s285 + $0x8] sm:$0xff] %v1782
      %1799 = vst [vmem:[%s285 + $0x10] sm:$0xff] %v1783
      %1800 = vst [vmem:[%s285 + $0x18] sm:$0xff] %v1784
      %1801 = vst [vmem:[%s285 + $0x20] sm:$0xff] %v1785
      %1802 = vst [vmem:[%s285 + $0x28] sm:$0xff] %v1786
      %1803 = vst [vmem:[%s285 + $0x30] sm:$0xff] %v1787
      %1804 = vst [vmem:[%s285 + $0x38] sm:$0xff] %v1788
      %1805 = vst [vmem:[%s285 + $0x40] sm:$0xff] %v1789
      %1806 = vst [vmem:[%s285 + $0x48] sm:$0xff] %v1790
      %1807 = vst [vmem:[%s285 + $0x50] sm:$0xff] %v1791
      %1808 = vst [vmem:[%s285 + $0x58] sm:$0xff] %v1792
      %1809 = vst [vmem:[%s285 + $0x60] sm:$0xff] %v1793
      %1810 = vst [vmem:[%s285 + $0x68] sm:$0xff] %v1794
      %1811 = vst [vmem:[%s285 + $0x70] sm:$0xff] %v1795
      %1812 = vst [vmem:[%s285 + $0x78] sm:$0xff] %v1796
      %s1813 = smul.u32 8, %s18
      %p1814 = scmp.lt.s32.totalorder %s1813, 15
      %s1815 = scalar_select %p1814, %s1813, 15
      %s1816 = smul.addr %s1815, 2
      %s1817 = smul.addr %s1816, 8
      %s1818 = scalar_lea.vmem %s7, %s1817
      // Predicated region
      $region49: #{basic_block_pallas.1} parent=47 // pred_check
        %p1819 = pneg %p188
      $region50: #{basic_block_pallas.1} parent=47 // pred_check_branch
        %1821 = sbr.rel (%p1819) target = $region52
      $region51: #{basic_block_pallas.1} parent=47 // pred_region
        %s1822 = smul.u32 8, %s18
      $region52: #{basic_block_pallas.1} parent=47 // pred_fallthru
        _
    $region48: #{basic_block_pallas.1} parent=5 // pred_fallthru
      _
    %p1823 = scmp.le.s32.totalorder 2, %s13
    // Predicated region
    $region53: #{basic_block_pallas.1} parent=5 // pred_check
      %p1824 = pneg %p1823
    $region54: #{basic_block_pallas.1} parent=5 // pred_check_branch
      %1826 = sbr.rel (%p1824) target = $region56
    $region55: #{basic_block_pallas.1} parent=5 // pred_region
      %s1827 = ssub.s32 %s13, 2
      // Predicated region
      $region57: #{basic_block_pallas.1} parent=55 // pred_check
        %p1828 = pneg %p194
      $region58: #{basic_block_pallas.1} parent=55 // pred_check_branch
        %1830 = sbr.rel (%p1828) target = $region60
      $region59: #{basic_block_pallas.1} parent=55 // pred_region
        %s1831 = smul.u32 8, %s19
        %p1832 = scmp.lt.s32.totalorder %s1831, 15
        %s1833 = scalar_select %p1832, %s1831, 15
        %s1834 = smul.addr %s1833, 2
        %s1835 = smul.addr %s1834, 8
        %s1836 = scalar_lea.vmem %s7, %s1835
      $region60: #{basic_block_pallas.1} parent=55 // pred_fallthru
        _
    $region56: #{basic_block_pallas.1} parent=5 // pred_fallthru
      _
  $region6: #{basic_block_pallas.1} parent=0 // loop_footer
    %s17 = sadd.s32 1, %s13
  $region7: #{basic_block_pallas.1} parent=0 // loop_footer_branch
    %12 = sbr.rel target = $region3
  $region8: #{basic_block_pallas.1} parent=0 // loop_exit
    _

</llo_original>
